<compile_context>
chip_gen: v7x
topology: tpu7x:2x2x1
jax: 0.10.0
libtpu: 0.0.40
codegen_flags: <defaults>
</compile_context>

<pallas_src>
from functools import partial
from typing import NamedTuple

import jax
import jax.numpy as jnp
from jax import lax
from jax.experimental import pallas as pl
from jax.experimental.pallas import tpu as pltpu


_LANE = 128
_SUBLANE = 8
_SCALAR_LANES = 128      # lane0=action, 1=log_prob, 2=entropy, 3=value
_NEG_INF = float(jnp.finfo(jnp.float32).min)


def _round_up(x, m):
    return ((x + m - 1) // m) * m


def _device_info():
    """(vmem_capacity_bytes, is_v5e) with safe fallbacks."""
    vmem_cap = 128 * 1024 * 1024
    try:
        vmem_cap = int(pltpu.get_tpu_info().vmem_capacity_bytes)
    except Exception:
        pass
    kind = ""
    try:
        kind = jax.devices()[0].device_kind.lower()
    except Exception:
        pass
    is_v5e = ("v5e" in kind) or ("v5 lite" in kind) or ("v5litepod" in kind)
    return vmem_cap, is_v5e


class Dims(NamedTuple):
    feature_dim: int
    action_dim: int
    hidden_dim: int
    f_pad: int
    a_pad: int
    h_pad: int
    tk: int
    tb_max: int
    vmem_budget: int


def _finalize(gi_raw, h0_ref, wih_scale_ref, whh_ref, bih_ref, bhh_ref,
              whead_ref, bhead_ref, mask_ref, gumbel_ref,
              scalars_ref, probs_ref, hidden_ref):
    """GRU gates + fused policy/value head + masked categorical, one batch tile."""
    Hp = hidden_ref.shape[-1]
    Ap = probs_ref.shape[-1]

    h0 = h0_ref[...]                                            # (TB, Hp) f32
    # int8 dequant + input bias (b_ih folded here instead of an init pass)
    gi = gi_raw * wih_scale_ref[...] + bih_ref[...]             # (TB, 3Hp) f32
    gh = jnp.dot(h0.astype(jnp.bfloat16), whh_ref[...],
                 preferred_element_type=jnp.float32) + bhh_ref[...]

    # PyTorch GRUCell gate order (r, z, n); gate boundaries are 128-aligned.
    r = jax.nn.sigmoid(gi[:, 0:Hp] + gh[:, 0:Hp])
    z = jax.nn.sigmoid(gi[:, Hp:2 * Hp] + gh[:, Hp:2 * Hp])
    n = jnp.tanh(gi[:, 2 * Hp:3 * Hp] + r * gh[:, 2 * Hp:3 * Hp])
    h = (1.0 - z) * n + z * h0                                  # (TB, Hp) f32

    # fused action + value head: one (TB,Hp)x(Hp,Ap) matmul
    head = jnp.dot(h.astype(jnp.bfloat16), whead_ref[...],
                   preferred_element_type=jnp.float32) + bhead_ref[...]

    lane = lax.broadcasted_iota(jnp.int32, head.shape, 1)
    valid = mask_ref[...] != 0                                  # (TB, Ap) bool

    # value head lives in the last (always masked-out) lane of the fused head
    value = jnp.sum(jnp.where(lane == Ap - 1, head, 0.0),
                    axis=-1, keepdims=True)                     # (TB, 1)

    # masked categorical (torch CategoricalMasked semantics), exact softmax
    logits = jnp.where(valid, head, _NEG_INF)
    m = jnp.max(logits, axis=-1, keepdims=True)
    ex = jnp.exp(logits - m)
    sum_ex = jnp.sum(ex, axis=-1, keepdims=True)
    probs = ex / sum_ex
    norm_logits = (logits - m) - jnp.log(sum_ex)

    # Gumbel-max sample (noise supplied by wrapper); ties -> lowest index.
    # An all-masked row degenerates to action 0 (torch is degenerate there too).
    perturbed = jnp.where(valid, norm_logits + gumbel_ref[...], _NEG_INF)
    pmax = jnp.max(perturbed, axis=-1, keepdims=True)
    cand = jnp.where(perturbed == pmax, lane, Ap)
    action = jnp.min(cand, axis=-1, keepdims=True)              # (TB, 1) int32

    log_prob = jnp.sum(jnp.where(lane == action, norm_logits, 0.0),
                       axis=-1, keepdims=True)
    p_log_p = jnp.where(valid, norm_logits, 0.0) * probs        # NaN-safe
    entropy = -jnp.sum(p_log_p, axis=-1, keepdims=True)

    # lane-dense stores
    slane = lax.broadcasted_iota(jnp.int32, scalars_ref.shape, 1)
    scalars_ref[...] = jnp.where(
        slane == 0, action.astype(jnp.float32),
        jnp.where(slane == 1, log_prob,
                  jnp.where(slane == 2, entropy,
                            jnp.where(slane == 3, value, 0.0))))
    probs_ref[...] = probs
    hidden_ref[...] = h


def _policy_kernel(x_ref, h0_ref, wih_ref, wih_scale_ref, whh_ref, bih_ref,
                   bhh_ref, whead_ref, bhead_ref, mask_ref, gumbel_ref,
                   scalars_ref, probs_ref, hidden_ref, gi_acc=None, *, nk):
    """One batch tile.  grid=(nb,) when w_ih is resident, else (nb, nk)."""
    # gi partial: x @ W_ih (int8 weight dequantized to bf16 in VMEM, f32 accum)
    part = jnp.dot(x_ref[...], wih_ref[...].astype(jnp.bfloat16),
                   preferred_element_type=jnp.float32)

    if nk == 1:
        # resident-weight fast path: no accumulator, no per-step phases
        _finalize(part, h0_ref, wih_scale_ref, whh_ref, bih_ref, bhh_ref,
                  whead_ref, bhead_ref, mask_ref, gumbel_ref,
                  scalars_ref, probs_ref, hidden_ref)
    else:
        k = pl.program_id(1)

        @pl.when(k == 0)
        def _():
            gi_acc[...] = part          # no init/broadcast pass

        @pl.when(k != 0)
        def _():
            gi_acc[...] += part

        @pl.when(k == nk - 1)
        def _():
            _finalize(gi_acc[...], h0_ref, wih_scale_ref, whh_ref, bih_ref,
                      bhh_ref, whead_ref, bhead_ref, mask_ref, gumbel_ref,
                      scalars_ref, probs_ref, hidden_ref)


def init_params(key, feature_dim, action_dim, gru_hidden_dim=128):
    """Uniform init mirroring PyTorch defaults; weights stored as (in, out)."""
    ks = jax.random.split(key, 8)
    H, F, A = gru_hidden_dim, feature_dim, action_dim
    bound = 1.0 / jnp.sqrt(H)

    def u(kk, shape):
        return jax.random.uniform(kk, shape, jnp.float32, -bound, bound)

    return {
        "w_ih": u(ks[0], (F, 3 * H)),   # transpose of torch (3H, F)
        "w_hh": u(ks[1], (H, 3 * H)),   # transpose of torch (3H, H)
        "b_ih": u(ks[2], (1, 3 * H)),
        "b_hh": u(ks[3], (1, 3 * H)),
        "w_pol": u(ks[4], (H, A)),      # transpose of torch (A, H)
        "b_pol": u(ks[5], (1, A)),
        "w_val": u(ks[6], (H, 1)),      # transpose of torch (1, H)
        "b_val": u(ks[7], (1, 1)),
    }


def pack_params(params, feature_dim, action_dim, gru_hidden_dim,
                quantize_w_ih=True):
    """Pad to lane-aligned shapes, fuse the value head, quantize/cast weights."""
    H, F, A = gru_hidden_dim, feature_dim, action_dim
    Hp = _round_up(H, _LANE)
    Ap = _round_up(A + 1, _LANE)          # +1 reserves the last lane for value head

    vmem_cap, is_v5e = _device_info()
    vmem_budget = max(32 * 1024 * 1024, int(0.75 * vmem_cap))
    tb_max = 128 if is_v5e else 256
    wbytes = 1 if quantize_w_ih else 2

    # adaptive K tile: resident w_ih (single k step) if it fits ~half the budget,
    # otherwise the largest power-of-two tile up to 2048 whose streamed
    # double-buffers (w_ih block + x block) fit.
    F128 = _round_up(F, _LANE)
    stream_budget = vmem_budget // 2

    def stream_cost(tk):
        return 2 * tk * 3 * Hp * wbytes + 2 * tb_max * tk * 2

    if stream_cost(F128) <= stream_budget:
        TK = F128
    else:
        TK = 2048
        while TK > _LANE and stream_cost(TK) > stream_budget:
            TK //= 2
    Fp = _round_up(F, TK)

    def pad_gates(w):                      # (in, 3H) -> (in, 3Hp), per-gate pad
        gates = [w[:, g * H:(g + 1) * H] for g in range(3)]
        return jnp.concatenate(
            [jnp.pad(g, ((0, 0), (0, Hp - H))) for g in gates], axis=1)

    w_ih = jnp.pad(pad_gates(params["w_ih"]), ((0, Fp - F), (0, 0)))   # (Fp, 3Hp)
    w_hh = jnp.pad(pad_gates(params["w_hh"]), ((0, Hp - H), (0, 0)))
    b_ih = pad_gates(params["b_ih"])
    b_hh = pad_gates(params["b_hh"])

    if quantize_w_ih:
        # symmetric per-output-column int8; dequant scale applied to gi in-kernel
        scale = jnp.max(jnp.abs(w_ih), axis=0, keepdims=True) / 127.0  # (1, 3Hp)
        scale = jnp.where(scale == 0.0, 1.0, scale)
        w_ih_store = jnp.clip(jnp.round(w_ih / scale), -127.0,
                              127.0).astype(jnp.int8)
        w_ih_scale = scale.astype(jnp.float32)
    else:
        w_ih_store = w_ih.astype(jnp.bfloat16)
        w_ih_scale = jnp.ones((1, 3 * Hp), jnp.float32)

    w_head = jnp.zeros((Hp, Ap), jnp.float32)
    w_head = w_head.at[:H, :A].set(params["w_pol"])
    w_head = w_head.at[:H, Ap - 1].set(params["w_val"][:, 0])
    b_head = jnp.zeros((1, Ap), jnp.float32)
    b_head = b_head.at[:, :A].set(params["b_pol"])
    b_head = b_head.at[0, Ap - 1].set(params["b_val"][0, 0])

    packed = {
        "w_ih": w_ih_store,
        "w_ih_scale": w_ih_scale,
        "w_hh": w_hh.astype(jnp.bfloat16),
        "w_head": w_head.astype(jnp.bfloat16),
        "b_ih": b_ih,
        "b_hh": b_hh,
        "b_head": b_head,
    }
    return packed, Dims(F, A, H, Fp, Ap, Hp, TK, tb_max, vmem_budget)


def shared_gru_policy_forward(obs, packed, dims, gumbel, states_gru=None, mask=None):
    B = obs.shape[0]
    F, A, H = dims.feature_dim, dims.action_dim, dims.hidden_dim
    Fp, Ap, Hp, TK = dims.f_pad, dims.a_pad, dims.h_pad, dims.tk

    TB = min(dims.tb_max, _round_up(B, _SUBLANE))
    Bp = _round_up(B, TB)
    nb, nk = Bp // TB, Fp // TK

    # FlattenExtractor (NCHW row-major flatten) + pad, single cast to bf16
    x = jnp.pad(obs.reshape(B, -1).astype(jnp.bfloat16),
                ((0, Bp - B), (0, Fp - F)))

    if states_gru is None:
        h0 = jnp.zeros((Bp, Hp), jnp.float32)
    else:
        h0 = jnp.pad(states_gru.astype(jnp.float32), ((0, Bp - B), (0, Hp - H)))

    # real-action lanes valid (reproduces mask=None exactly); padded lanes off
    mask_p = jnp.zeros((Bp, Ap), jnp.int32).at[:, :A].set(1)
    if mask is not None:
        mask_p = mask_p.at[:B, :A].set(mask.astype(jnp.int32))

    gum = jnp.pad(gumbel.astype(jnp.float32), ((0, Bp - B), (0, Ap - A)))

    if nk == 1:
        # w_ih fully resident: pure parallel batch loop, no accumulator scratch
        grid = (nb,)
        sem = ("parallel",)
        row = lambda i: (i, 0)
        const = lambda i: (0, 0)
        x_map = lambda i: (i, 0)
        w_map = lambda i: (0, 0)
        scratch = []
    else:
        grid = (nb, nk)
        sem = ("parallel", "arbitrary")
        row = lambda i, k: (i, 0)
        const = lambda i, k: (0, 0)
        x_map = lambda i, k: (i, k)
        w_map = lambda i, k: (k, 0)
        scratch = [pltpu.VMEM((TB, 3 * Hp), jnp.float32)]
        # TODO(synk): for very large F with exposed weight DMA, add
        # pipeline_mode=pl.Buffered(3) on the x / w_ih BlockSpecs.

    in_specs = [
        pl.BlockSpec((TB, TK), x_map),                 # x (streamed)
        pl.BlockSpec((TB, Hp), row),                   # h0
        pl.BlockSpec((TK, 3 * Hp), w_map),             # w_ih (int8, tiled/resident)
        pl.BlockSpec((1, 3 * Hp), const),              # w_ih dequant scale
        pl.BlockSpec((Hp, 3 * Hp), const),             # w_hh (resident)
        pl.BlockSpec((1, 3 * Hp), const),              # b_ih
        pl.BlockSpec((1, 3 * Hp), const),              # b_hh
        pl.BlockSpec((Hp, Ap), const),                 # fused policy+value weight
        pl.BlockSpec((1, Ap), const),                  # fused policy+value bias
        pl.BlockSpec((TB, Ap), row),                   # mask
        pl.BlockSpec((TB, Ap), row),                   # gumbel noise
    ]
    out_specs = (
        pl.BlockSpec((TB, _SCALAR_LANES), row),        # packed scalars
        pl.BlockSpec((TB, Ap), row),                   # probs
        pl.BlockSpec((TB, Hp), row),                   # hidden
    )
    out_shapes = (
        jax.ShapeDtypeStruct((Bp, _SCALAR_LANES), jnp.float32),
        jax.ShapeDtypeStruct((Bp, Ap), jnp.float32),
        jax.ShapeDtypeStruct((Bp, Hp), jnp.float32),
    )

    # rough VMEM footprint of the chosen tiles (double-buffered), with margin,
    # capped at ~75% of the generation's physical VMEM
    wbytes = packed["w_ih"].dtype.itemsize
    est = (2 * TB * TK * 2                        # x blocks (bf16)
           + 2 * TK * 3 * Hp * wbytes             # w_ih blocks
           + 2 * (Hp * 3 * Hp + Hp * Ap) * 2      # resident bf16 weights
           + 2 * _SUBLANE * (3 * 3 * Hp + 2 * Ap) * 4   # scale + bias rows
           + 2 * TB * (2 * Hp + 3 * Ap + _SCALAR_LANES) * 4   # acts in/out
           + (0 if nk == 1 else TB * 3 * Hp * 4)) # gi accumulator
    vmem_limit = int(min(max(2 * est, 32 * 1024 * 1024), dims.vmem_budget))

    kernel = partial(_policy_kernel, nk=nk)
    scalars, probs_p, hidden_p = pl.pallas_call(
        kernel,
        grid=grid,
        in_specs=in_specs,
        out_specs=out_specs,
        out_shape=out_shapes,
        scratch_shapes=scratch,
        input_output_aliases={1: 2},               # states_gru buffer -> hidden
        compiler_params=pltpu.CompilerParams(
            dimension_semantics=sem,
            vmem_limit_bytes=vmem_limit),
    )(x, h0,
      packed["w_ih"], packed["w_ih_scale"], packed["w_hh"],
      packed["b_ih"], packed["b_hh"],
      packed["w_head"], packed["b_head"], mask_p, gum)

    action = scalars[:B, 0].astype(jnp.int32)
    log_prob = scalars[:B, 1]
    entropy = scalars[:B, 2]
    value = scalars[:B, 3:4]                       # (B, 1), like torch ValueNet
    policy = probs_p[:B, :A]
    hidden = hidden_p[:B, :H]
    return action, policy, log_prob, entropy, value, hidden


# TODO(synk): multi-step rollouts - move the time loop inside the kernel
# (grid axis over T, h carried in VMEM scratch) so weights are DMA'd once per
# rollout instead of once per step.
# TODO(synk): v7x small-batch (nb==1) case - split the 3Hp gate columns across
# the two TensorCores (VMEM_SHARED partials + run_on_first_core finalize) so the
# second core is not idle.


if __name__ == "__main__":
    key = jax.random.PRNGKey(0)
    k_obs, k_param, k_samp = jax.random.split(key, 3)

    # batch=2, channels=4, spatial=16x16 -> feature_dim=1024
    B, C, Hs, Ws = 2, 4, 16, 16
    feature_dim = C * Hs * Ws
    action_dim = 8
    gru_hidden_dim = 32

    obs = jax.random.normal(k_obs, (B, C, Hs, Ws), jnp.float32)
    params = init_params(k_param, feature_dim, action_dim, gru_hidden_dim)
    packed, dims = pack_params(params, feature_dim, action_dim, gru_hidden_dim)

    # Gumbel noise for in-kernel categorical sampling (Gumbel-max)
    u = jax.random.uniform(k_samp, (B, action_dim), jnp.float32,
                           minval=1e-6, maxval=1.0 - 1e-6)
    gumbel = -jnp.log(-jnp.log(u))

    outs = shared_gru_policy_forward(obs, packed, dims, gumbel,
                                     states_gru=None, mask=None)
    outs = jax.block_until_ready(outs)
    action, policy, log_prob, entropy, value, hidden = outs

    assert action.shape == (B,)
    assert policy.shape == (B, action_dim)
    assert log_prob.shape == (B,)
    assert entropy.shape == (B,)
    assert value.shape == (B, 1)
    assert hidden.shape == (B, gru_hidden_dim)
    assert bool(jnp.all(jnp.isfinite(policy)))
    assert bool(jnp.all(jnp.abs(jnp.sum(policy, axis=-1) - 1.0) < 1e-3))
    assert bool(jnp.all((action >= 0) & (action < action_dim)))
    print("KERNEL_OK")
</pallas_src>

<mosaic_0001>
module attributes {stable_mosaic.version = 11 : i64} {
  func.func @_policy_kernel(%arg0: i32, %arg1: memref<8x1024xbf16, #tpu.memory_space<vmem>>, %arg2: memref<8x128xf32, #tpu.memory_space<vmem>>, %arg3: memref<1024x384xi8, #tpu.memory_space<vmem>>, %arg4: memref<1x384xf32, #tpu.memory_space<vmem>>, %arg5: memref<128x384xbf16, #tpu.memory_space<vmem>>, %arg6: memref<1x384xf32, #tpu.memory_space<vmem>>, %arg7: memref<1x384xf32, #tpu.memory_space<vmem>>, %arg8: memref<128x128xbf16, #tpu.memory_space<vmem>>, %arg9: memref<1x128xf32, #tpu.memory_space<vmem>>, %arg10: memref<8x128xi32, #tpu.memory_space<vmem>>, %arg11: memref<8x128xf32, #tpu.memory_space<vmem>>, %arg12: memref<8x128xf32, #tpu.memory_space<vmem>>, %arg13: memref<8x128xf32, #tpu.memory_space<vmem>>, %arg14: memref<8x128xf32, #tpu.memory_space<vmem>>) attributes {dimension_semantics = [#tpu.dimension_semantics<parallel>], iteration_bounds = array<i64: 1>, scalar_prefetch = 0 : i64, scratch_operands = 0 : i64, tpu.core_type = #tpu.core_type<tc>, window_params = [{transform_indices = @transform_0, window_bounds = array<i64: 8, 1024>}, {transform_indices = @transform_1, window_bounds = array<i64: 8, 128>}, {pipeline_mode = #tpu.pipeline_mode<synchronous>, transform_indices = @transform_2, window_bounds = array<i64: 1024, 384>}, {pipeline_mode = #tpu.pipeline_mode<synchronous>, transform_indices = @transform_3, window_bounds = array<i64: 1, 384>}, {pipeline_mode = #tpu.pipeline_mode<synchronous>, transform_indices = @transform_4, window_bounds = array<i64: 128, 384>}, {pipeline_mode = #tpu.pipeline_mode<synchronous>, transform_indices = @transform_5, window_bounds = array<i64: 1, 384>}, {pipeline_mode = #tpu.pipeline_mode<synchronous>, transform_indices = @transform_6, window_bounds = array<i64: 1, 384>}, {pipeline_mode = #tpu.pipeline_mode<synchronous>, transform_indices = @transform_7, window_bounds = array<i64: 128, 128>}, {pipeline_mode = #tpu.pipeline_mode<synchronous>, transform_indices = @transform_8, window_bounds = array<i64: 1, 128>}, {transform_indices = @transform_9, window_bounds = array<i64: 8, 128>}, {transform_indices = @transform_10, window_bounds = array<i64: 8, 128>}, {transform_indices = @transform_11, window_bounds = array<i64: 8, 128>}, {transform_indices = @transform_12, window_bounds = array<i64: 8, 128>}, {transform_indices = @transform_13, window_bounds = array<i64: 8, 128>}]} {
    %c0 = arith.constant 0 : index
    %c0_0 = arith.constant 0 : index
    %0 = vector.load %arg1[%c0, %c0_0] : memref<8x1024xbf16, #tpu.memory_space<vmem>>, vector<8x1024xbf16>
    %c0_1 = arith.constant 0 : index
    %c0_2 = arith.constant 0 : index
    %1 = vector.load %arg3[%c0_1, %c0_2] : memref<1024x384xi8, #tpu.memory_space<vmem>>, vector<1024x384xi8>
    %2 = arith.sitofp %1 : vector<1024x384xi8> to vector<1024x384xbf16>
    %cst = arith.constant dense<0.000000e+00> : vector<8x384xf32>
    %3 = tpu.matmul %0, %2, %cst {dimension_numbers = #tpu.dot_dimension_numbers<[1], [0], [0], [1], [0, 0, 1, 1], [], []>} : vector<8x1024xbf16>, vector<1024x384xbf16>, vector<8x384xf32> -> vector<8x384xf32>
    %c0_3 = arith.constant 0 : index
    %c0_4 = arith.constant 0 : index
    %4 = vector.load %arg2[%c0_3, %c0_4] : memref<8x128xf32, #tpu.memory_space<vmem>>, vector<8x128xf32>
    %c0_5 = arith.constant 0 : index
    %c0_6 = arith.constant 0 : index
    %5 = vector.load %arg4[%c0_5, %c0_6] : memref<1x384xf32, #tpu.memory_space<vmem>>, vector<1x384xf32>
    %6 = vector.broadcast %5 : vector<1x384xf32> to vector<8x384xf32>
    %7 = arith.mulf %3, %6 : vector<8x384xf32>
    %c0_7 = arith.constant 0 : index
    %c0_8 = arith.constant 0 : index
    %8 = vector.load %arg6[%c0_7, %c0_8] : memref<1x384xf32, #tpu.memory_space<vmem>>, vector<1x384xf32>
    %9 = vector.broadcast %8 : vector<1x384xf32> to vector<8x384xf32>
    %10 = arith.addf %7, %9 : vector<8x384xf32>
    %11 = arith.truncf %4 : vector<8x128xf32> to vector<8x128xbf16>
    %c0_9 = arith.constant 0 : index
    %c0_10 = arith.constant 0 : index
    %12 = vector.load %arg5[%c0_9, %c0_10] : memref<128x384xbf16, #tpu.memory_space<vmem>>, vector<128x384xbf16>
    %cst_11 = arith.constant dense<0.000000e+00> : vector<8x384xf32>
    %13 = tpu.matmul %11, %12, %cst_11 {dimension_numbers = #tpu.dot_dimension_numbers<[1], [0], [0], [1], [0, 0, 1, 1], [], []>} : vector<8x128xbf16>, vector<128x384xbf16>, vector<8x384xf32> -> vector<8x384xf32>
    %c0_12 = arith.constant 0 : index
    %c0_13 = arith.constant 0 : index
    %14 = vector.load %arg7[%c0_12, %c0_13] : memref<1x384xf32, #tpu.memory_space<vmem>>, vector<1x384xf32>
    %15 = vector.broadcast %14 : vector<1x384xf32> to vector<8x384xf32>
    %16 = arith.addf %13, %15 : vector<8x384xf32>
    %17 = vector.extract_strided_slice %10 {offsets = [0, 0], sizes = [8, 128], strides = [1, 1]} : vector<8x384xf32> to vector<8x128xf32>
    %18 = vector.extract_strided_slice %16 {offsets = [0, 0], sizes = [8, 128], strides = [1, 1]} : vector<8x384xf32> to vector<8x128xf32>
    %19 = arith.addf %17, %18 : vector<8x128xf32>
    %20 = arith.negf %19 : vector<8x128xf32>
    %21 = math.exp %20 : vector<8x128xf32>
    %cst_14 = arith.constant 1.000000e+00 : f32
    %22 = vector.broadcast %cst_14 : f32 to vector<8x128xf32>
    %23 = arith.addf %22, %21 : vector<8x128xf32>
    %24 = arith.divf %22, %23 : vector<8x128xf32>
    %25 = vector.extract_strided_slice %10 {offsets = [0, 128], sizes = [8, 128], strides = [1, 1]} : vector<8x384xf32> to vector<8x128xf32>
    %26 = vector.extract_strided_slice %16 {offsets = [0, 128], sizes = [8, 128], strides = [1, 1]} : vector<8x384xf32> to vector<8x128xf32>
    %27 = arith.addf %25, %26 : vector<8x128xf32>
    %28 = arith.negf %27 : vector<8x128xf32>
    %29 = math.exp %28 : vector<8x128xf32>
    %cst_15 = arith.constant 1.000000e+00 : f32
    %30 = vector.broadcast %cst_15 : f32 to vector<8x128xf32>
    %31 = arith.addf %30, %29 : vector<8x128xf32>
    %32 = arith.divf %30, %31 : vector<8x128xf32>
    %33 = vector.extract_strided_slice %10 {offsets = [0, 256], sizes = [8, 128], strides = [1, 1]} : vector<8x384xf32> to vector<8x128xf32>
    %34 = vector.extract_strided_slice %16 {offsets = [0, 256], sizes = [8, 128], strides = [1, 1]} : vector<8x384xf32> to vector<8x128xf32>
    %35 = arith.mulf %24, %34 : vector<8x128xf32>
    %36 = arith.addf %33, %35 : vector<8x128xf32>
    %37 = math.tanh %36 : vector<8x128xf32>
    %cst_16 = arith.constant 1.000000e+00 : f32
    %38 = vector.broadcast %cst_16 : f32 to vector<8x128xf32>
    %39 = arith.subf %38, %32 : vector<8x128xf32>
    %40 = arith.mulf %39, %37 : vector<8x128xf32>
    %41 = arith.mulf %32, %4 : vector<8x128xf32>
    %42 = arith.addf %40, %41 : vector<8x128xf32>
    %43 = arith.truncf %42 : vector<8x128xf32> to vector<8x128xbf16>
    %c0_17 = arith.constant 0 : index
    %c0_18 = arith.constant 0 : index
    %44 = vector.load %arg8[%c0_17, %c0_18] : memref<128x128xbf16, #tpu.memory_space<vmem>>, vector<128x128xbf16>
    %cst_19 = arith.constant dense<0.000000e+00> : vector<8x128xf32>
    %45 = tpu.matmul %43, %44, %cst_19 {dimension_numbers = #tpu.dot_dimension_numbers<[1], [0], [0], [1], [0, 0, 1, 1], [], []>} : vector<8x128xbf16>, vector<128x128xbf16>, vector<8x128xf32> -> vector<8x128xf32>
    %c0_20 = arith.constant 0 : index
    %c0_21 = arith.constant 0 : index
    %46 = vector.load %arg9[%c0_20, %c0_21] : memref<1x128xf32, #tpu.memory_space<vmem>>, vector<1x128xf32>
    %47 = vector.broadcast %46 : vector<1x128xf32> to vector<8x128xf32>
    %48 = arith.addf %45, %47 : vector<8x128xf32>
    %49 = tpu.iota {dimensions = array<i32: 1>} : vector<8x128xi32>
    %c0_22 = arith.constant 0 : index
    %c0_23 = arith.constant 0 : index
    %50 = vector.load %arg10[%c0_22, %c0_23] : memref<8x128xi32, #tpu.memory_space<vmem>>, vector<8x128xi32>
    %c0_i32 = arith.constant 0 : i32
    %51 = vector.broadcast %c0_i32 : i32 to vector<8x128xi32>
    %52 = arith.cmpi ne, %50, %51 : vector<8x128xi32>
    %c127_i32 = arith.constant 127 : i32
    %53 = vector.broadcast %c127_i32 : i32 to vector<8x128xi32>
    %54 = arith.cmpi eq, %49, %53 : vector<8x128xi32>
    %cst_24 = arith.constant 0.000000e+00 : f32
    %55 = vector.broadcast %cst_24 : f32 to vector<8x128xf32>
    %56 = arith.select %54, %48, %55 : vector<8x128xi1>, vector<8x128xf32>
    %cst_25 = arith.constant dense<0.000000e+00> : vector<8xf32>
    %57 = vector.multi_reduction <add>, %56, %cst_25 [1] : vector<8x128xf32> to vector<8xf32>
    %58 = vector.shape_cast %57 : vector<8xf32> to vector<8x1xf32>
    %cst_26 = arith.constant -3.40282347E+38 : f32
    %59 = vector.broadcast %cst_26 : f32 to vector<8x128xf32>
    %60 = arith.select %52, %48, %59 : vector<8x128xi1>, vector<8x128xf32>
    %cst_27 = arith.constant dense<0xFF800000> : vector<8xf32>
    %61 = vector.multi_reduction <maximumf>, %60, %cst_27 [1] : vector<8x128xf32> to vector<8xf32>
    %62 = vector.shape_cast %61 : vector<8xf32> to vector<8x1xf32>
    %63 = vector.broadcast %62 : vector<8x1xf32> to vector<8x128xf32>
    %64 = arith.subf %60, %63 : vector<8x128xf32>
    %65 = math.exp %64 : vector<8x128xf32>
    %cst_28 = arith.constant dense<0.000000e+00> : vector<8xf32>
    %66 = vector.multi_reduction <add>, %65, %cst_28 [1] : vector<8x128xf32> to vector<8xf32>
    %67 = vector.shape_cast %66 : vector<8xf32> to vector<8x1xf32>
    %68 = vector.broadcast %67 : vector<8x1xf32> to vector<8x128xf32>
    %69 = arith.divf %65, %68 : vector<8x128xf32>
    %70 = vector.broadcast %62 : vector<8x1xf32> to vector<8x128xf32>
    %71 = arith.subf %60, %70 : vector<8x128xf32>
    %72 = math.log %67 : vector<8x1xf32>
    %73 = vector.broadcast %72 : vector<8x1xf32> to vector<8x128xf32>
    %74 = arith.subf %71, %73 : vector<8x128xf32>
    %c0_29 = arith.constant 0 : index
    %c0_30 = arith.constant 0 : index
    %75 = vector.load %arg11[%c0_29, %c0_30] : memref<8x128xf32, #tpu.memory_space<vmem>>, vector<8x128xf32>
    %76 = arith.addf %74, %75 : vector<8x128xf32>
    %cst_31 = arith.constant -3.40282347E+38 : f32
    %77 = vector.broadcast %cst_31 : f32 to vector<8x128xf32>
    %78 = arith.select %52, %76, %77 : vector<8x128xi1>, vector<8x128xf32>
    %cst_32 = arith.constant dense<0xFF800000> : vector<8xf32>
    %79 = vector.multi_reduction <maximumf>, %78, %cst_32 [1] : vector<8x128xf32> to vector<8xf32>
    %80 = vector.shape_cast %79 : vector<8xf32> to vector<8x1xf32>
    %81 = vector.broadcast %80 : vector<8x1xf32> to vector<8x128xf32>
    %82 = arith.cmpf oeq, %78, %81 : vector<8x128xf32>
    %c128_i32 = arith.constant 128 : i32
    %83 = vector.broadcast %c128_i32 : i32 to vector<8x128xi32>
    %84 = arith.select %82, %49, %83 : vector<8x128xi1>, vector<8x128xi32>
    %cst_33 = arith.constant dense<2147483647> : vector<8xi32>
    %85 = vector.multi_reduction <minsi>, %84, %cst_33 [1] : vector<8x128xi32> to vector<8xi32>
    %86 = vector.shape_cast %85 : vector<8xi32> to vector<8x1xi32>
    %87 = vector.broadcast %86 : vector<8x1xi32> to vector<8x128xi32>
    %88 = arith.cmpi eq, %49, %87 : vector<8x128xi32>
    %cst_34 = arith.constant 0.000000e+00 : f32
    %89 = vector.broadcast %cst_34 : f32 to vector<8x128xf32>
    %90 = arith.select %88, %74, %89 : vector<8x128xi1>, vector<8x128xf32>
    %cst_35 = arith.constant dense<0.000000e+00> : vector<8xf32>
    %91 = vector.multi_reduction <add>, %90, %cst_35 [1] : vector<8x128xf32> to vector<8xf32>
    %92 = vector.shape_cast %91 : vector<8xf32> to vector<8x1xf32>
    %cst_36 = arith.constant 0.000000e+00 : f32
    %93 = vector.broadcast %cst_36 : f32 to vector<8x128xf32>
    %94 = arith.select %52, %74, %93 : vector<8x128xi1>, vector<8x128xf32>
    %95 = arith.mulf %94, %69 : vector<8x128xf32>
    %cst_37 = arith.constant dense<0.000000e+00> : vector<8xf32>
    %96 = vector.multi_reduction <add>, %95, %cst_37 [1] : vector<8x128xf32> to vector<8xf32>
    %97 = vector.shape_cast %96 : vector<8xf32> to vector<8x1xf32>
    %cst_38 = arith.constant 0.000000e+00 : f32
    %98 = vector.broadcast %cst_38 : f32 to vector<8x1xf32>
    %99 = arith.subf %98, %97 : vector<8x1xf32>
    %100 = tpu.iota {dimensions = array<i32: 1>} : vector<8x128xi32>
    %c0_i32_39 = arith.constant 0 : i32
    %101 = vector.broadcast %c0_i32_39 : i32 to vector<8x128xi32>
    %102 = arith.cmpi eq, %100, %101 : vector<8x128xi32>
    %103 = arith.sitofp %86 : vector<8x1xi32> to vector<8x1xf32>
    %c1_i32 = arith.constant 1 : i32
    %104 = vector.broadcast %c1_i32 : i32 to vector<8x128xi32>
    %105 = arith.cmpi eq, %100, %104 : vector<8x128xi32>
    %c2_i32 = arith.constant 2 : i32
    %106 = vector.broadcast %c2_i32 : i32 to vector<8x128xi32>
    %107 = arith.cmpi eq, %100, %106 : vector<8x128xi32>
    %c3_i32 = arith.constant 3 : i32
    %108 = vector.broadcast %c3_i32 : i32 to vector<8x128xi32>
    %109 = arith.cmpi eq, %100, %108 : vector<8x128xi32>
    %cst_40 = arith.constant 0.000000e+00 : f32
    %110 = vector.shape_cast %58 : vector<8x1xf32> to vector<8x1xf32>
    %111 = vector.broadcast %110 : vector<8x1xf32> to vector<8x128xf32>
    %112 = vector.broadcast %cst_40 : f32 to vector<8x128xf32>
    %113 = arith.select %109, %111, %112 : vector<8x128xi1>, vector<8x128xf32>
    %114 = vector.shape_cast %99 : vector<8x1xf32> to vector<8x1xf32>
    %115 = vector.broadcast %114 : vector<8x1xf32> to vector<8x128xf32>
    %116 = arith.select %107, %115, %113 : vector<8x128xi1>, vector<8x128xf32>
    %117 = vector.shape_cast %92 : vector<8x1xf32> to vector<8x1xf32>
    %118 = vector.broadcast %117 : vector<8x1xf32> to vector<8x128xf32>
    %119 = arith.select %105, %118, %116 : vector<8x128xi1>, vector<8x128xf32>
    %120 = vector.shape_cast %103 : vector<8x1xf32> to vector<8x1xf32>
    %121 = vector.broadcast %120 : vector<8x1xf32> to vector<8x128xf32>
    %122 = arith.select %102, %121, %119 : vector<8x128xi1>, vector<8x128xf32>
    %c0_41 = arith.constant 0 : index
    %c0_42 = arith.constant 0 : index
    %123 = vector.load %arg12[%c0_41, %c0_42] : memref<8x128xf32, #tpu.memory_space<vmem>>, vector<8x128xf32>
    tpu.vector_store %arg12[%c0_41, %c0_42], %122 {strides = array<i32>} : memref<8x128xf32, #tpu.memory_space<vmem>>, vector<8x128xf32>,
    %c0_43 = arith.constant 0 : index
    %c0_44 = arith.constant 0 : index
    %124 = vector.load %arg13[%c0_43, %c0_44] : memref<8x128xf32, #tpu.memory_space<vmem>>, vector<8x128xf32>
    tpu.vector_store %arg13[%c0_43, %c0_44], %69 {strides = array<i32>} : memref<8x128xf32, #tpu.memory_space<vmem>>, vector<8x128xf32>,
    %c0_45 = arith.constant 0 : index
    %c0_46 = arith.constant 0 : index
    %125 = vector.load %arg14[%c0_45, %c0_46] : memref<8x128xf32, #tpu.memory_space<vmem>>, vector<8x128xf32>
    tpu.vector_store %arg14[%c0_45, %c0_46], %42 {strides = array<i32>} : memref<8x128xf32, #tpu.memory_space<vmem>>, vector<8x128xf32>,
    return
  }
  func.func @transform_0(%arg0: i32) -> (i32, i32) {
    %c0_i32 = arith.constant 0 : i32
    %c0_i32_0 = arith.constant 0 : i32
    return %arg0, %c0_i32 : i32, i32
  }
  func.func @transform_1(%arg0: i32) -> (i32, i32) {
    %c0_i32 = arith.constant 0 : i32
    %c0_i32_0 = arith.constant 0 : i32
    return %arg0, %c0_i32 : i32, i32
  }
  func.func @transform_2(%arg0: i32) -> (i32, i32) {
    %c0_i32 = arith.constant 0 : i32
    %c0_i32_0 = arith.constant 0 : i32
    %c0_i32_1 = arith.constant 0 : i32
    return %c0_i32, %c0_i32_0 : i32, i32
  }
  func.func @transform_3(%arg0: i32) -> (i32, i32) {
    %c0_i32 = arith.constant 0 : i32
    %c0_i32_0 = arith.constant 0 : i32
    %c0_i32_1 = arith.constant 0 : i32
    return %c0_i32, %c0_i32_0 : i32, i32
  }
  func.func @transform_4(%arg0: i32) -> (i32, i32) {
    %c0_i32 = arith.constant 0 : i32
    %c0_i32_0 = arith.constant 0 : i32
    %c0_i32_1 = arith.constant 0 : i32
    return %c0_i32, %c0_i32_0 : i32, i32
  }
  func.func @transform_5(%arg0: i32) -> (i32, i32) {
    %c0_i32 = arith.constant 0 : i32
    %c0_i32_0 = arith.constant 0 : i32
    %c0_i32_1 = arith.constant 0 : i32
    return %c0_i32, %c0_i32_0 : i32, i32
  }
  func.func @transform_6(%arg0: i32) -> (i32, i32) {
    %c0_i32 = arith.constant 0 : i32
    %c0_i32_0 = arith.constant 0 : i32
    %c0_i32_1 = arith.constant 0 : i32
    return %c0_i32, %c0_i32_0 : i32, i32
  }
  func.func @transform_7(%arg0: i32) -> (i32, i32) {
    %c0_i32 = arith.constant 0 : i32
    %c0_i32_0 = arith.constant 0 : i32
    %c0_i32_1 = arith.constant 0 : i32
    return %c0_i32, %c0_i32_0 : i32, i32
  }
  func.func @transform_8(%arg0: i32) -> (i32, i32) {
    %c0_i32 = arith.constant 0 : i32
    %c0_i32_0 = arith.constant 0 : i32
    %c0_i32_1 = arith.constant 0 : i32
    return %c0_i32, %c0_i32_0 : i32, i32
  }
  func.func @transform_9(%arg0: i32) -> (i32, i32) {
    %c0_i32 = arith.constant 0 : i32
    %c0_i32_0 = arith.constant 0 : i32
    return %arg0, %c0_i32 : i32, i32
  }
  func.func @transform_10(%arg0: i32) -> (i32, i32) {
    %c0_i32 = arith.constant 0 : i32
    %c0_i32_0 = arith.constant 0 : i32
    return %arg0, %c0_i32 : i32, i32
  }
  func.func @transform_11(%arg0: i32) -> (i32, i32) {
    %c0_i32 = arith.constant 0 : i32
    %c0_i32_0 = arith.constant 0 : i32
    return %arg0, %c0_i32 : i32, i32
  }
  func.func @transform_12(%arg0: i32) -> (i32, i32) {
    %c0_i32 = arith.constant 0 : i32
    %c0_i32_0 = arith.constant 0 : i32
    return %arg0, %c0_i32 : i32, i32
  }
  func.func @transform_13(%arg0: i32) -> (i32, i32) {
    %c0_i32 = arith.constant 0 : i32
    %c0_i32_0 = arith.constant 0 : i32
    return %arg0, %c0_i32 : i32, i32
  }
}

</mosaic_0001>

<llo_original>
// kernel: tpu_custom_call.1
$region0: #{tpu_custom_call.1}
  #allocation0 [shape = 'u32[]', space=smem, size = 0x4, offset = 0x4, fixed_abs, tag = 'smem constant byte address 0x4 - core index']
  #allocation1 [shape = 'u32[144,128]{1,0:T(1,128)}', space=vmem, size = 0x12000, scoped, tag = 'internal scratch']
  %s0 = inlined_call_operand.vmem [shape: bf16[8,1024], index: 0, kind: input, shape index: {}]
  %s1 = inlined_call_operand.hbm [shape: f32[8,128], index: 1, kind: input, shape index: {}, may-alias: {1,13}]
  %s2 = inlined_call_operand.hbm [shape: s8[1024,384], index: 2, kind: input, shape index: {}]
  %s3 = inlined_call_operand.vmem [shape: f32[1,384], index: 3, kind: input, shape index: {}]
  %s4 = inlined_call_operand.hbm [shape: bf16[128,384], index: 4, kind: input, shape index: {}]
  %s5 = inlined_call_operand.hbm [shape: f32[1,384], index: 5, kind: input, shape index: {}]
  %s6 = inlined_call_operand.hbm [shape: f32[1,384], index: 6, kind: input, shape index: {}]
  %s7 = inlined_call_operand.hbm [shape: bf16[128,128], index: 7, kind: input, shape index: {}]
  %s8 = inlined_call_operand.vmem [shape: f32[1,128], index: 8, kind: input, shape index: {}]
  %s9 = inlined_call_operand.vmem [shape: s32[8,128], index: 9, kind: input, shape index: {}]
  %s10 = inlined_call_operand.vmem [shape: f32[8,128], index: 10, kind: input, shape index: {}]
  %s11 = inlined_call_operand.hbm [shape: f32[8,128], index: 11, kind: output, shape index: {0}]
  %s12 = inlined_call_operand.hbm [shape: f32[8,128], index: 12, kind: output, shape index: {1}]
  %s13 = inlined_call_operand.hbm [shape: f32[8,128], index: 13, kind: output, shape index: {2}, may-alias: {1,13}]
  %14 = xla_tuple %s11, %s12, %s13
  %s15 = sld [smem:[#allocation0]]
  $region94: #{tpu_custom_call.1} parent=0
    _
  %s17 = ssub.s32 1, %s15
  %s18 = scalar_select 0, %s17, %s15
  $region1: #{tpu_custom_call.1} parent=0
    #allocation2 [shape = 'u8[4096]{0}', space=vmem, size = 0x1000, scoped, tag = 'input window, operand 1, single buffered']
    #allocation3 [shape = 's32[1]{0}', space=sflag, size = 0x4, scoped, tag = 'scoped memory for tpu_custom_call.1']
    #allocation4 [shape = 's32[1]{0}', space=sflag, size = 0x4, scoped, tag = 'scoped memory for tpu_custom_call.1']
    #allocation5 [shape = 'u8[393216]{0}', space=vmem, size = 0x60000, scoped, tag = 'input window, operand 2, single buffered']
    #allocation6 [shape = 's32[1]{0}', space=sflag, size = 0x4, scoped, tag = 'scoped memory for tpu_custom_call.1']
    #allocation7 [shape = 'u8[98304]{0}', space=vmem, size = 0x18000, scoped, tag = 'input window, operand 4, single buffered']
    #allocation8 [shape = 'u8[1536]{0}', space=vmem, size = 0x800, scoped, tag = 'input window, operand 5, single buffered']
    #allocation9 [shape = 's32[1]{0}', space=sflag, size = 0x4, scoped, tag = 'scoped memory for tpu_custom_call.1']
    #allocation10 [shape = 'u8[1536]{0}', space=vmem, size = 0x800, scoped, tag = 'input window, operand 6, single buffered']
    #allocation11 [shape = 'u8[32768]{0}', space=vmem, size = 0x8000, scoped, tag = 'input window, operand 7, single buffered']
    #allocation12 [shape = 's32[1]{0}', space=sflag, size = 0x4, scoped, tag = 'scoped memory for tpu_custom_call.1']
    #allocation13 [shape = 'u8[4096]{0}', space=vmem, size = 0x1000, scoped, tag = 'output window, operand 0, single buffered']
    #allocation14 [shape = 'u8[4096]{0}', space=vmem, size = 0x1000, scoped, tag = 'output window, operand 1, single buffered']
    #allocation15 [shape = 's32[1]{0}', space=sflag, size = 0x4, scoped, tag = 'scoped memory for tpu_custom_call.1']
    #allocation16 [shape = 'u8[4096]{0}', space=vmem, size = 0x1000, scoped, tag = 'output window, operand 2, single buffered']
    %19 = vsyncpa [#allocation3], 0
    %20 = vsyncpa [#allocation6], 0
    %21 = vsyncpa [#allocation9], 0
    %22 = vsyncpa [#allocation12], 0
    %23 = vsyncpa [#allocation4], 0
    %24 = vsyncpa [#allocation15], 0
    // Predicated region
    $region2: #{tpu_custom_call.1} parent=1 // pred_check
      _
    $region3: #{tpu_custom_call.1} parent=1 // pred_check_branch
      %26 = sbr.rel (0) target = $region5
    $region4: #{tpu_custom_call.1} parent=1 // pred_region
      _
    $region5: #{tpu_custom_call.1} parent=1 // pred_fallthru
      _
    // Predicated region
    $region6: #{tpu_custom_call.1} parent=1 // pred_check
      _
    $region7: #{tpu_custom_call.1} parent=1 // pred_check_branch
      %28 = sbr.rel (0) target = $region9
    $region8: #{tpu_custom_call.1} parent=1 // pred_region
      %s30 = ssub.s32 128, 128
      %31 = vsyncadd [#allocation3], %s30
      %s33 = sshll.u32 [#allocation2], 4
      %s34 = int_to_ptr.vmem [resolvable:$true] %s33
      %36 = dma.hbm_to_vmem [thread:$0]  %s1, 128, %s34, [#allocation3]
    $region9: #{tpu_custom_call.1} parent=1 // pred_fallthru
      _
    // Predicated region
    $region10: #{tpu_custom_call.1} parent=1 // pred_check
      _
    $region11: #{tpu_custom_call.1} parent=1 // pred_check_branch
      %38 = sbr.rel (0) target = $region13
    $region12: #{tpu_custom_call.1} parent=1 // pred_region
      %s40 = ssub.s32 12288, 12288
      %41 = vsyncadd [#allocation6], %s40
      %s42 = sshll.u32 [#allocation5], 4
      %s43 = int_to_ptr.vmem [resolvable:$true] %s42
      %48 = dma.hbm_to_vmem [thread:$0]  %s2, 12288, %s43, [#allocation6], 384, 384, 24
    $region13: #{tpu_custom_call.1} parent=1 // pred_fallthru
      _
    // Predicated region
    $region14: #{tpu_custom_call.1} parent=1 // pred_check
      _
    $region15: #{tpu_custom_call.1} parent=1 // pred_check_branch
      %50 = sbr.rel (0) target = $region17
    $region16: #{tpu_custom_call.1} parent=1 // pred_region
      _
    $region17: #{tpu_custom_call.1} parent=1 // pred_fallthru
      _
    // Predicated region
    $region18: #{tpu_custom_call.1} parent=1 // pred_check
      _
    $region19: #{tpu_custom_call.1} parent=1 // pred_check_branch
      %52 = sbr.rel (0) target = $region21
    $region20: #{tpu_custom_call.1} parent=1 // pred_region
      %s54 = ssub.s32 3072, 3072
      %55 = vsyncadd [#allocation6], %s54
      %s56 = sshll.u32 [#allocation7], 4
      %s57 = int_to_ptr.vmem [resolvable:$true] %s56
      %62 = dma.hbm_to_vmem [thread:$0]  %s4, 3072, %s57, [#allocation6], 192, 192, 12
    $region21: #{tpu_custom_call.1} parent=1 // pred_fallthru
      _
    // Predicated region
    $region22: #{tpu_custom_call.1} parent=1 // pred_check
      _
    $region23: #{tpu_custom_call.1} parent=1 // pred_check_branch
      %64 = sbr.rel (0) target = $region25
    $region24: #{tpu_custom_call.1} parent=1 // pred_region
      %s66 = ssub.s32 48, 48
      %67 = vsyncadd [#allocation9], %s66
      %s69 = sshll.u32 [#allocation8], 4
      %s70 = int_to_ptr.vmem [resolvable:$true] %s69
      %72 = dma.hbm_to_vmem [thread:$0]  %s5, 48, %s70, [#allocation9]
    $region25: #{tpu_custom_call.1} parent=1 // pred_fallthru
      _
    // Predicated region
    $region26: #{tpu_custom_call.1} parent=1 // pred_check
      _
    $region27: #{tpu_custom_call.1} parent=1 // pred_check_branch
      %74 = sbr.rel (0) target = $region29
    $region28: #{tpu_custom_call.1} parent=1 // pred_region
      %s76 = ssub.s32 48, 48
      %77 = vsyncadd [#allocation9], %s76
      %s79 = sshll.u32 [#allocation10], 4
      %s80 = int_to_ptr.vmem [resolvable:$true] %s79
      %82 = dma.hbm_to_vmem [thread:$0]  %s6, 48, %s80, [#allocation9]
    $region29: #{tpu_custom_call.1} parent=1 // pred_fallthru
      _
    // Predicated region
    $region30: #{tpu_custom_call.1} parent=1 // pred_check
      _
    $region31: #{tpu_custom_call.1} parent=1 // pred_check_branch
      %84 = sbr.rel (0) target = $region33
    $region32: #{tpu_custom_call.1} parent=1 // pred_region
      %s86 = ssub.s32 1024, 1024
      %87 = vsyncadd [#allocation12], %s86
      %s88 = sshll.u32 [#allocation11], 4
      %s89 = int_to_ptr.vmem [resolvable:$true] %s88
      %94 = dma.hbm_to_vmem [thread:$0]  %s7, 1024, %s89, [#allocation12], 64, 64, 4
    $region33: #{tpu_custom_call.1} parent=1 // pred_fallthru
      _
    // Predicated region
    $region34: #{tpu_custom_call.1} parent=1 // pred_check
      _
    $region35: #{tpu_custom_call.1} parent=1 // pred_check_branch
      %96 = sbr.rel (0) target = $region37
    $region36: #{tpu_custom_call.1} parent=1 // pred_region
      _
    $region37: #{tpu_custom_call.1} parent=1 // pred_fallthru
      _
    // Predicated region
    $region38: #{tpu_custom_call.1} parent=1 // pred_check
      _
    $region39: #{tpu_custom_call.1} parent=1 // pred_check_branch
      %98 = sbr.rel (0) target = $region41
    $region40: #{tpu_custom_call.1} parent=1 // pred_region
      _
    $region41: #{tpu_custom_call.1} parent=1 // pred_fallthru
      _
    // Predicated region
    $region42: #{tpu_custom_call.1} parent=1 // pred_check
      _
    $region43: #{tpu_custom_call.1} parent=1 // pred_check_branch
      %100 = sbr.rel (0) target = $region45
    $region44: #{tpu_custom_call.1} parent=1 // pred_region
      _
    $region45: #{tpu_custom_call.1} parent=1 // pred_fallthru
      _
    // Predicated region
    $region46: #{tpu_custom_call.1} parent=1 // pred_check
      _
    $region47: #{tpu_custom_call.1} parent=1 // pred_check_branch
      %102 = sbr.rel (0) target = $region49
    $region48: #{tpu_custom_call.1} parent=1 // pred_region
      %103 = dma.done [#allocation3], 128
    $region49: #{tpu_custom_call.1} parent=1 // pred_fallthru
      _
    // Predicated region
    $region50: #{tpu_custom_call.1} parent=1 // pred_check
      _
    $region51: #{tpu_custom_call.1} parent=1 // pred_check_branch
      %105 = sbr.rel (0) target = $region53
    $region52: #{tpu_custom_call.1} parent=1 // pred_region
      %106 = dma.done [#allocation6], 12288
    $region53: #{tpu_custom_call.1} parent=1 // pred_fallthru
      _
    // Predicated region
    $region54: #{tpu_custom_call.1} parent=1 // pred_check
      _
    $region55: #{tpu_custom_call.1} parent=1 // pred_check_branch
      %108 = sbr.rel (0) target = $region57
    $region56: #{tpu_custom_call.1} parent=1 // pred_region
      %109 = dma.done [#allocation6], 3072
    $region57: #{tpu_custom_call.1} parent=1 // pred_fallthru
      _
    // Predicated region
    $region58: #{tpu_custom_call.1} parent=1 // pred_check
      _
    $region59: #{tpu_custom_call.1} parent=1 // pred_check_branch
      %111 = sbr.rel (0) target = $region61
    $region60: #{tpu_custom_call.1} parent=1 // pred_region
      %112 = dma.done [#allocation9], 48
    $region61: #{tpu_custom_call.1} parent=1 // pred_fallthru
      _
    // Predicated region
    $region62: #{tpu_custom_call.1} parent=1 // pred_check
      _
    $region63: #{tpu_custom_call.1} parent=1 // pred_check_branch
      %114 = sbr.rel (0) target = $region65
    $region64: #{tpu_custom_call.1} parent=1 // pred_region
      %115 = dma.done [#allocation9], 48
    $region65: #{tpu_custom_call.1} parent=1 // pred_fallthru
      _
    // Predicated region
    $region66: #{tpu_custom_call.1} parent=1 // pred_check
      _
    $region67: #{tpu_custom_call.1} parent=1 // pred_check_branch
      %117 = sbr.rel (0) target = $region69
    $region68: #{tpu_custom_call.1} parent=1 // pred_region
      %118 = dma.done [#allocation12], 1024
    $region69: #{tpu_custom_call.1} parent=1 // pred_fallthru
      _
    %v120 = vld [vmem:[%s0] sm:$0xff]
    %v121 = vld [vmem:[%s0 + $0x8] sm:$0xff]
    %v122 = vld [vmem:[%s0 + $0x10] sm:$0xff]
    %v123 = vld [vmem:[%s0 + $0x18] sm:$0xff]
    %v124 = vld [vmem:[#allocation5] sm:$0xff]
    %v125 = vld [vmem:[#allocation5 + $0x8] sm:$0xff]
    %v126 = vld [vmem:[#allocation5 + $0x10] sm:$0xff]
    %v127 = vld [vmem:[#allocation5 + $0x18] sm:$0xff]
    %v128 = vld [vmem:[#allocation5 + $0x20] sm:$0xff]
    %v129 = vld [vmem:[#allocation5 + $0x28] sm:$0xff]
    %v130 = vld [vmem:[#allocation5 + $0x30] sm:$0xff]
    %v131 = vld [vmem:[#allocation5 + $0x38] sm:$0xff]
    %v132 = vld [vmem:[#allocation5 + $0x40] sm:$0xff]
    %v133 = vld [vmem:[#allocation5 + $0x48] sm:$0xff]
    %v134 = vld [vmem:[#allocation5 + $0x50] sm:$0xff]
    %v135 = vld [vmem:[#allocation5 + $0x58] sm:$0xff]
    %v136 = vld [vmem:[#allocation5 + $0x60] sm:$0xff]
    %v137 = vld [vmem:[#allocation5 + $0x68] sm:$0xff]
    %v138 = vld [vmem:[#allocation5 + $0x70] sm:$0xff]
    %v139 = vld [vmem:[#allocation5 + $0x78] sm:$0xff]
    %v140 = vld [vmem:[#allocation5 + $0x80] sm:$0xff]
    %v141 = vld [vmem:[#allocation5 + $0x88] sm:$0xff]
    %v142 = vld [vmem:[#allocation5 + $0x90] sm:$0xff]
    %v143 = vld [vmem:[#allocation5 + $0x98] sm:$0xff]
    %v144 = vld [vmem:[#allocation5 + $0xa0] sm:$0xff]
    %v145 = vld [vmem:[#allocation5 + $0xa8] sm:$0xff]
    %v146 = vld [vmem:[#allocation5 + $0xb0] sm:$0xff]
    %v147 = vld [vmem:[#allocation5 + $0xb8] sm:$0xff]
    %v148 = vld [vmem:[#allocation5 + $0xc0] sm:$0xff]
    %v149 = vld [vmem:[#allocation5 + $0xc8] sm:$0xff]
    %v150 = vld [vmem:[#allocation5 + $0xd0] sm:$0xff]
    %v151 = vld [vmem:[#allocation5 + $0xd8] sm:$0xff]
    %v152 = vld [vmem:[#allocation5 + $0xe0] sm:$0xff]
    %v153 = vld [vmem:[#allocation5 + $0xe8] sm:$0xff]
    %v154 = vld [vmem:[#allocation5 + $0xf0] sm:$0xff]
    %v155 = vld [vmem:[#allocation5 + $0xf8] sm:$0xff]
    %v156 = vld [vmem:[#allocation5 + $0x100] sm:$0xff]
    %v157 = vld [vmem:[#allocation5 + $0x108] sm:$0xff]
    %v158 = vld [vmem:[#allocation5 + $0x110] sm:$0xff]
    %v159 = vld [vmem:[#allocation5 + $0x118] sm:$0xff]
    %v160 = vld [vmem:[#allocation5 + $0x120] sm:$0xff]
    %v161 = vld [vmem:[#allocation5 + $0x128] sm:$0xff]
    %v162 = vld [vmem:[#allocation5 + $0x130] sm:$0xff]
    %v163 = vld [vmem:[#allocation5 + $0x138] sm:$0xff]
    %v164 = vld [vmem:[#allocation5 + $0x140] sm:$0xff]
    %v165 = vld [vmem:[#allocation5 + $0x148] sm:$0xff]
    %v166 = vld [vmem:[#allocation5 + $0x150] sm:$0xff]
    %v167 = vld [vmem:[#allocation5 + $0x158] sm:$0xff]
    %v168 = vld [vmem:[#allocation5 + $0x160] sm:$0xff]
    %v169 = vld [vmem:[#allocation5 + $0x168] sm:$0xff]
    %v170 = vld [vmem:[#allocation5 + $0x170] sm:$0xff]
    %v171 = vld [vmem:[#allocation5 + $0x178] sm:$0xff]
    %v172 = vld [vmem:[#allocation5 + $0x180] sm:$0xff]
    %v173 = vld [vmem:[#allocation5 + $0x188] sm:$0xff]
    %v174 = vld [vmem:[#allocation5 + $0x190] sm:$0xff]
    %v175 = vld [vmem:[#allocation5 + $0x198] sm:$0xff]
    %v176 = vld [vmem:[#allocation5 + $0x1a0] sm:$0xff]
    %v177 = vld [vmem:[#allocation5 + $0x1a8] sm:$0xff]
    %v178 = vld [vmem:[#allocation5 + $0x1b0] sm:$0xff]
    %v179 = vld [vmem:[#allocation5 + $0x1b8] sm:$0xff]
    %v180 = vld [vmem:[#allocation5 + $0x1c0] sm:$0xff]
    %v181 = vld [vmem:[#allocation5 + $0x1c8] sm:$0xff]
    %v182 = vld [vmem:[#allocation5 + $0x1d0] sm:$0xff]
    %v183 = vld [vmem:[#allocation5 + $0x1d8] sm:$0xff]
    %v184 = vld [vmem:[#allocation5 + $0x1e0] sm:$0xff]
    %v185 = vld [vmem:[#allocation5 + $0x1e8] sm:$0xff]
    %v186 = vld [vmem:[#allocation5 + $0x1f0] sm:$0xff]
    %v187 = vld [vmem:[#allocation5 + $0x1f8] sm:$0xff]
    %v188 = vld [vmem:[#allocation5 + $0x200] sm:$0xff]
    %v189 = vld [vmem:[#allocation5 + $0x208] sm:$0xff]
    %v190 = vld [vmem:[#allocation5 + $0x210] sm:$0xff]
    %v191 = vld [vmem:[#allocation5 + $0x218] sm:$0xff]
    %v192 = vld [vmem:[#allocation5 + $0x220] sm:$0xff]
    %v193 = vld [vmem:[#allocation5 + $0x228] sm:$0xff]
    %v194 = vld [vmem:[#allocation5 + $0x230] sm:$0xff]
    %v195 = vld [vmem:[#allocation5 + $0x238] sm:$0xff]
    %v196 = vld [vmem:[#allocation5 + $0x240] sm:$0xff]
    %v197 = vld [vmem:[#allocation5 + $0x248] sm:$0xff]
    %v198 = vld [vmem:[#allocation5 + $0x250] sm:$0xff]
    %v199 = vld [vmem:[#allocation5 + $0x258] sm:$0xff]
    %v200 = vld [vmem:[#allocation5 + $0x260] sm:$0xff]
    %v201 = vld [vmem:[#allocation5 + $0x268] sm:$0xff]
    %v202 = vld [vmem:[#allocation5 + $0x270] sm:$0xff]
    %v203 = vld [vmem:[#allocation5 + $0x278] sm:$0xff]
    %v204 = vld [vmem:[#allocation5 + $0x280] sm:$0xff]
    %v205 = vld [vmem:[#allocation5 + $0x288] sm:$0xff]
    %v206 = vld [vmem:[#allocation5 + $0x290] sm:$0xff]
    %v207 = vld [vmem:[#allocation5 + $0x298] sm:$0xff]
    %v208 = vld [vmem:[#allocation5 + $0x2a0] sm:$0xff]
    %v209 = vld [vmem:[#allocation5 + $0x2a8] sm:$0xff]
    %v210 = vld [vmem:[#allocation5 + $0x2b0] sm:$0xff]
    %v211 = vld [vmem:[#allocation5 + $0x2b8] sm:$0xff]
    %v212 = vld [vmem:[#allocation5 + $0x2c0] sm:$0xff]
    %v213 = vld [vmem:[#allocation5 + $0x2c8] sm:$0xff]
    %v214 = vld [vmem:[#allocation5 + $0x2d0] sm:$0xff]
    %v215 = vld [vmem:[#allocation5 + $0x2d8] sm:$0xff]
    %v216 = vld [vmem:[#allocation5 + $0x2e0] sm:$0xff]
    %v217 = vld [vmem:[#allocation5 + $0x2e8] sm:$0xff]
    %v218 = vld [vmem:[#allocation5 + $0x2f0] sm:$0xff]
    %v219 = vld [vmem:[#allocation5 + $0x2f8] sm:$0xff]
    %v220 = vunpack.c.l.s8.bf16 %v124
    %v221 = vunpack.c.l.s8.bf16 %v125
    %v222 = vunpack.c.l.s8.bf16 %v126
    %v223 = vunpack.c.h.s8.bf16 %v124
    %v224 = vunpack.c.h.s8.bf16 %v125
    %v225 = vunpack.c.h.s8.bf16 %v126
    %v226 = vunpack.c.l.s8.bf16 %v127
    %v227 = vunpack.c.l.s8.bf16 %v128
    %v228 = vunpack.c.l.s8.bf16 %v129
    %v229 = vunpack.c.h.s8.bf16 %v127
    %v230 = vunpack.c.h.s8.bf16 %v128
    %v231 = vunpack.c.h.s8.bf16 %v129
    %v232 = vunpack.c.l.s8.bf16 %v130
    %v233 = vunpack.c.l.s8.bf16 %v131
    %v234 = vunpack.c.l.s8.bf16 %v132
    %v235 = vunpack.c.h.s8.bf16 %v130
    %v236 = vunpack.c.h.s8.bf16 %v131
    %v237 = vunpack.c.h.s8.bf16 %v132
    %v238 = vunpack.c.l.s8.bf16 %v133
    %v239 = vunpack.c.l.s8.bf16 %v134
    %v240 = vunpack.c.l.s8.bf16 %v135
    %v241 = vunpack.c.h.s8.bf16 %v133
    %v242 = vunpack.c.h.s8.bf16 %v134
    %v243 = vunpack.c.h.s8.bf16 %v135
    %v244 = vunpack.c.l.s8.bf16 %v136
    %v245 = vunpack.c.l.s8.bf16 %v137
    %v246 = vunpack.c.l.s8.bf16 %v138
    %v247 = vunpack.c.h.s8.bf16 %v136
    %v248 = vunpack.c.h.s8.bf16 %v137
    %v249 = vunpack.c.h.s8.bf16 %v138
    %v250 = vunpack.c.l.s8.bf16 %v139
    %v251 = vunpack.c.l.s8.bf16 %v140
    %v252 = vunpack.c.l.s8.bf16 %v141
    %v253 = vunpack.c.h.s8.bf16 %v139
    %v254 = vunpack.c.h.s8.bf16 %v140
    %v255 = vunpack.c.h.s8.bf16 %v141
    %v256 = vunpack.c.l.s8.bf16 %v142
    %v257 = vunpack.c.l.s8.bf16 %v143
    %v258 = vunpack.c.l.s8.bf16 %v144
    %v259 = vunpack.c.h.s8.bf16 %v142
    %v260 = vunpack.c.h.s8.bf16 %v143
    %v261 = vunpack.c.h.s8.bf16 %v144
    %v262 = vunpack.c.l.s8.bf16 %v145
    %v263 = vunpack.c.l.s8.bf16 %v146
    %v264 = vunpack.c.l.s8.bf16 %v147
    %v265 = vunpack.c.h.s8.bf16 %v145
    %v266 = vunpack.c.h.s8.bf16 %v146
    %v267 = vunpack.c.h.s8.bf16 %v147
    %v268 = vunpack.c.l.s8.bf16 %v148
    %v269 = vunpack.c.l.s8.bf16 %v149
    %v270 = vunpack.c.l.s8.bf16 %v150
    %v271 = vunpack.c.h.s8.bf16 %v148
    %v272 = vunpack.c.h.s8.bf16 %v149
    %v273 = vunpack.c.h.s8.bf16 %v150
    %v274 = vunpack.c.l.s8.bf16 %v151
    %v275 = vunpack.c.l.s8.bf16 %v152
    %v276 = vunpack.c.l.s8.bf16 %v153
    %v277 = vunpack.c.h.s8.bf16 %v151
    %v278 = vunpack.c.h.s8.bf16 %v152
    %v279 = vunpack.c.h.s8.bf16 %v153
    %v280 = vunpack.c.l.s8.bf16 %v154
    %v281 = vunpack.c.l.s8.bf16 %v155
    %v282 = vunpack.c.l.s8.bf16 %v156
    %v283 = vunpack.c.h.s8.bf16 %v154
    %v284 = vunpack.c.h.s8.bf16 %v155
    %v285 = vunpack.c.h.s8.bf16 %v156
    %v286 = vunpack.c.l.s8.bf16 %v157
    %v287 = vunpack.c.l.s8.bf16 %v158
    %v288 = vunpack.c.l.s8.bf16 %v159
    %v289 = vunpack.c.h.s8.bf16 %v157
    %v290 = vunpack.c.h.s8.bf16 %v158
    %v291 = vunpack.c.h.s8.bf16 %v159
    %v292 = vunpack.c.l.s8.bf16 %v160
    %v293 = vunpack.c.l.s8.bf16 %v161
    %v294 = vunpack.c.l.s8.bf16 %v162
    %v295 = vunpack.c.h.s8.bf16 %v160
    %v296 = vunpack.c.h.s8.bf16 %v161
    %v297 = vunpack.c.h.s8.bf16 %v162
    %v298 = vunpack.c.l.s8.bf16 %v163
    %v299 = vunpack.c.l.s8.bf16 %v164
    %v300 = vunpack.c.l.s8.bf16 %v165
    %v301 = vunpack.c.h.s8.bf16 %v163
    %v302 = vunpack.c.h.s8.bf16 %v164
    %v303 = vunpack.c.h.s8.bf16 %v165
    %v304 = vunpack.c.l.s8.bf16 %v166
    %v305 = vunpack.c.l.s8.bf16 %v167
    %v306 = vunpack.c.l.s8.bf16 %v168
    %v307 = vunpack.c.h.s8.bf16 %v166
    %v308 = vunpack.c.h.s8.bf16 %v167
    %v309 = vunpack.c.h.s8.bf16 %v168
    %v310 = vunpack.c.l.s8.bf16 %v169
    %v311 = vunpack.c.l.s8.bf16 %v170
    %v312 = vunpack.c.l.s8.bf16 %v171
    %v313 = vunpack.c.h.s8.bf16 %v169
    %v314 = vunpack.c.h.s8.bf16 %v170
    %v315 = vunpack.c.h.s8.bf16 %v171
    %v316 = vunpack.c.l.s8.bf16 %v172
    %v317 = vunpack.c.l.s8.bf16 %v173
    %v318 = vunpack.c.l.s8.bf16 %v174
    %v319 = vunpack.c.h.s8.bf16 %v172
    %v320 = vunpack.c.h.s8.bf16 %v173
    %v321 = vunpack.c.h.s8.bf16 %v174
    %v322 = vunpack.c.l.s8.bf16 %v175
    %v323 = vunpack.c.l.s8.bf16 %v176
    %v324 = vunpack.c.l.s8.bf16 %v177
    %v325 = vunpack.c.h.s8.bf16 %v175
    %v326 = vunpack.c.h.s8.bf16 %v176
    %v327 = vunpack.c.h.s8.bf16 %v177
    %v328 = vunpack.c.l.s8.bf16 %v178
    %v329 = vunpack.c.l.s8.bf16 %v179
    %v330 = vunpack.c.l.s8.bf16 %v180
    %v331 = vunpack.c.h.s8.bf16 %v178
    %v332 = vunpack.c.h.s8.bf16 %v179
    %v333 = vunpack.c.h.s8.bf16 %v180
    %v334 = vunpack.c.l.s8.bf16 %v181
    %v335 = vunpack.c.l.s8.bf16 %v182
    %v336 = vunpack.c.l.s8.bf16 %v183
    %v337 = vunpack.c.h.s8.bf16 %v181
    %v338 = vunpack.c.h.s8.bf16 %v182
    %v339 = vunpack.c.h.s8.bf16 %v183
    %v340 = vunpack.c.l.s8.bf16 %v184
    %v341 = vunpack.c.l.s8.bf16 %v185
    %v342 = vunpack.c.l.s8.bf16 %v186
    %v343 = vunpack.c.h.s8.bf16 %v184
    %v344 = vunpack.c.h.s8.bf16 %v185
    %v345 = vunpack.c.h.s8.bf16 %v186
    %v346 = vunpack.c.l.s8.bf16 %v187
    %v347 = vunpack.c.l.s8.bf16 %v188
    %v348 = vunpack.c.l.s8.bf16 %v189
    %v349 = vunpack.c.h.s8.bf16 %v187
    %v350 = vunpack.c.h.s8.bf16 %v188
    %v351 = vunpack.c.h.s8.bf16 %v189
    %v352 = vunpack.c.l.s8.bf16 %v190
    %v353 = vunpack.c.l.s8.bf16 %v191
    %v354 = vunpack.c.l.s8.bf16 %v192
    %v355 = vunpack.c.h.s8.bf16 %v190
    %v356 = vunpack.c.h.s8.bf16 %v191
    %v357 = vunpack.c.h.s8.bf16 %v192
    %v358 = vunpack.c.l.s8.bf16 %v193
    %v359 = vunpack.c.l.s8.bf16 %v194
    %v360 = vunpack.c.l.s8.bf16 %v195
    %v361 = vunpack.c.h.s8.bf16 %v193
    %v362 = vunpack.c.h.s8.bf16 %v194
    %v363 = vunpack.c.h.s8.bf16 %v195
    %v364 = vunpack.c.l.s8.bf16 %v196
    %v365 = vunpack.c.l.s8.bf16 %v197
    %v366 = vunpack.c.l.s8.bf16 %v198
    %v367 = vunpack.c.h.s8.bf16 %v196
    %v368 = vunpack.c.h.s8.bf16 %v197
    %v369 = vunpack.c.h.s8.bf16 %v198
    %v370 = vunpack.c.l.s8.bf16 %v199
    %v371 = vunpack.c.l.s8.bf16 %v200
    %v372 = vunpack.c.l.s8.bf16 %v201
    %v373 = vunpack.c.h.s8.bf16 %v199
    %v374 = vunpack.c.h.s8.bf16 %v200
    %v375 = vunpack.c.h.s8.bf16 %v201
    %v376 = vunpack.c.l.s8.bf16 %v202
    %v377 = vunpack.c.l.s8.bf16 %v203
    %v378 = vunpack.c.l.s8.bf16 %v204
    %v379 = vunpack.c.h.s8.bf16 %v202
    %v380 = vunpack.c.h.s8.bf16 %v203
    %v381 = vunpack.c.h.s8.bf16 %v204
    %v382 = vunpack.c.l.s8.bf16 %v205
    %v383 = vunpack.c.l.s8.bf16 %v206
    %v384 = vunpack.c.l.s8.bf16 %v207
    %v385 = vunpack.c.h.s8.bf16 %v205
    %v386 = vunpack.c.h.s8.bf16 %v206
    %v387 = vunpack.c.h.s8.bf16 %v207
    %v388 = vunpack.c.l.s8.bf16 %v208
    %v389 = vunpack.c.l.s8.bf16 %v209
    %v390 = vunpack.c.l.s8.bf16 %v210
    %v391 = vunpack.c.h.s8.bf16 %v208
    %v392 = vunpack.c.h.s8.bf16 %v209
    %v393 = vunpack.c.h.s8.bf16 %v210
    %v394 = vunpack.c.l.s8.bf16 %v211
    %v395 = vunpack.c.l.s8.bf16 %v212
    %v396 = vunpack.c.l.s8.bf16 %v213
    %v397 = vunpack.c.h.s8.bf16 %v211
    %v398 = vunpack.c.h.s8.bf16 %v212
    %v399 = vunpack.c.h.s8.bf16 %v213
    %v400 = vunpack.c.l.s8.bf16 %v214
    %v401 = vunpack.c.l.s8.bf16 %v215
    %v402 = vunpack.c.l.s8.bf16 %v216
    %v403 = vunpack.c.h.s8.bf16 %v214
    %v404 = vunpack.c.h.s8.bf16 %v215
    %v405 = vunpack.c.h.s8.bf16 %v216
    %v406 = vunpack.c.l.s8.bf16 %v217
    %v407 = vunpack.c.l.s8.bf16 %v218
    %v408 = vunpack.c.l.s8.bf16 %v219
    %v409 = vunpack.c.h.s8.bf16 %v217
    %v410 = vunpack.c.h.s8.bf16 %v218
    %v411 = vunpack.c.h.s8.bf16 %v219
    %v416 = vunpack.c.l.b16 %v120
    %v417 = vunpack.c.h.b16 %v120
    %v418 = vunpack.c.l.b16 %v121
    %v419 = vunpack.c.h.b16 %v121
    %v420 = vunpack.c.l.b16 %v122
    %v421 = vunpack.c.h.b16 %v122
    %v422 = vunpack.c.l.b16 %v123
    %v423 = vunpack.c.h.b16 %v123
    %v424 = vpack.c.b16 %v416, %v416
    %v425 = vpack.c.b16 %v417, %v417
    %v426 = vpack.c.b16 %v418, %v418
    %v427 = vpack.c.b16 %v419, %v419
    %v428 = vpack.c.b16 %v420, %v420
    %v429 = vpack.c.b16 %v421, %v421
    %v430 = vpack.c.b16 %v422, %v422
    %v431 = vpack.c.b16 %v423, %v423
    %440 = vmatprep.subr.bf16.mxu0 %v221
    %441 = vmatpush1.bf16.msra.mxu0 %v220
    %442 = vmatprep.subr.bf16.mxu0 %v224
    %443 = vmatpush1.bf16.msra.mxu0 %v223
    %444 = vmatprep.subr.bf16.mxu0 %v227
    %445 = vmatpush1.bf16.msra.mxu0 %v226
    %446 = vmatprep.subr.bf16.mxu0 %v230
    %447 = vmatpush1.bf16.msra.mxu0 %v229
    %448 = vmatprep.subr.bf16.mxu0 %v233
    %449 = vmatpush1.bf16.msra.mxu0 %v232
    %450 = vmatprep.subr.bf16.mxu0 %v236
    %451 = vmatpush1.bf16.msra.mxu0 %v235
    %452 = vmatprep.subr.bf16.mxu0 %v239
    %453 = vmatpush1.bf16.msra.mxu0 %v238
    %454 = vmatprep.subr.bf16.mxu0 %v242
    %455 = vmatpush1.bf16.msra.mxu0 %v241
    %456 = vmatprep.subr.bf16.mxu0 %v245
    %457 = vmatpush1.bf16.msra.mxu0 %v244
    %458 = vmatprep.subr.bf16.mxu0 %v248
    %459 = vmatpush1.bf16.msra.mxu0 %v247
    %460 = vmatprep.subr.bf16.mxu0 %v251
    %461 = vmatpush1.bf16.msra.mxu0 %v250
    %462 = vmatprep.subr.bf16.mxu0 %v254
    %463 = vmatpush1.bf16.msra.mxu0 %v253
    %464 = vmatprep.subr.bf16.mxu0 %v257
    %465 = vmatpush1.bf16.msra.mxu0 %v256
    %466 = vmatprep.subr.bf16.mxu0 %v260
    %467 = vmatpush1.bf16.msra.mxu0 %v259
    %468 = vmatprep.subr.bf16.mxu0 %v263
    %469 = vmatpush1.bf16.msra.mxu0 %v262
    %470 = vmatprep.subr.bf16.mxu0 %v266
    %471 = vmatpush1.bf16.msra.mxu0 %v265
    %472 = vmatprep.mubr.bf16.mxu0 %v425
    %473 = vmatmul.mubr.bf16.gmra.mrb[0].mxu0 %v424
    %v474 = vpop.f32.mrb[0].mxu0
    %v475 = vadd.f32 0.0, %v474
    %v476 = vpop.f32.mrb[0].mxu0
    %v477 = vadd.f32 0.0, %v476
    %v478 = vpop.f32.mrb[0].mxu0
    %v479 = vpop.f32.mrb[0].mxu0
    %480 = vdwg.mxu0
    %481 = vmatprep.subr.bf16.mxu0 %v269
    %482 = vmatpush1.bf16.msra.mxu0 %v268
    %483 = vmatprep.subr.bf16.mxu0 %v272
    %484 = vmatpush1.bf16.msra.mxu0 %v271
    %485 = vmatprep.subr.bf16.mxu0 %v275
    %486 = vmatpush1.bf16.msra.mxu0 %v274
    %487 = vmatprep.subr.bf16.mxu0 %v278
    %488 = vmatpush1.bf16.msra.mxu0 %v277
    %489 = vmatprep.subr.bf16.mxu0 %v281
    %490 = vmatpush1.bf16.msra.mxu0 %v280
    %491 = vmatprep.subr.bf16.mxu0 %v284
    %492 = vmatpush1.bf16.msra.mxu0 %v283
    %493 = vmatprep.subr.bf16.mxu0 %v287
    %494 = vmatpush1.bf16.msra.mxu0 %v286
    %495 = vmatprep.subr.bf16.mxu0 %v290
    %496 = vmatpush1.bf16.msra.mxu0 %v289
    %497 = vmatprep.subr.bf16.mxu0 %v293
    %498 = vmatpush1.bf16.msra.mxu0 %v292
    %499 = vmatprep.subr.bf16.mxu0 %v296
    %500 = vmatpush1.bf16.msra.mxu0 %v295
    %501 = vmatprep.subr.bf16.mxu0 %v299
    %502 = vmatpush1.bf16.msra.mxu0 %v298
    %503 = vmatprep.subr.bf16.mxu0 %v302
    %504 = vmatpush1.bf16.msra.mxu0 %v301
    %505 = vmatprep.subr.bf16.mxu0 %v305
    %506 = vmatpush1.bf16.msra.mxu0 %v304
    %507 = vmatprep.subr.bf16.mxu0 %v308
    %508 = vmatpush1.bf16.msra.mxu0 %v307
    %509 = vmatprep.subr.bf16.mxu0 %v311
    %510 = vmatpush1.bf16.msra.mxu0 %v310
    %511 = vmatprep.subr.bf16.mxu0 %v314
    %512 = vmatpush1.bf16.msra.mxu0 %v313
    %513 = vmatprep.mubr.bf16.mxu0 %v427
    %514 = vmatmul.mubr.bf16.gmra.mrb[0].mxu0 %v426
    %v515 = vpop.f32.mrb[0].mxu0
    %v516 = vadd.f32 %v475, %v515
    %v517 = vpop.f32.mrb[0].mxu0
    %v518 = vadd.f32 %v477, %v517
    %v519 = vpop.f32.mrb[0].mxu0
    %v520 = vpop.f32.mrb[0].mxu0
    %521 = vdwg.mxu0
    %522 = vmatprep.subr.bf16.mxu0 %v317
    %523 = vmatpush1.bf16.msra.mxu0 %v316
    %524 = vmatprep.subr.bf16.mxu0 %v320
    %525 = vmatpush1.bf16.msra.mxu0 %v319
    %526 = vmatprep.subr.bf16.mxu0 %v323
    %527 = vmatpush1.bf16.msra.mxu0 %v322
    %528 = vmatprep.subr.bf16.mxu0 %v326
    %529 = vmatpush1.bf16.msra.mxu0 %v325
    %530 = vmatprep.subr.bf16.mxu0 %v329
    %531 = vmatpush1.bf16.msra.mxu0 %v328
    %532 = vmatprep.subr.bf16.mxu0 %v332
    %533 = vmatpush1.bf16.msra.mxu0 %v331
    %534 = vmatprep.subr.bf16.mxu0 %v335
    %535 = vmatpush1.bf16.msra.mxu0 %v334
    %536 = vmatprep.subr.bf16.mxu0 %v338
    %537 = vmatpush1.bf16.msra.mxu0 %v337
    %538 = vmatprep.subr.bf16.mxu0 %v341
    %539 = vmatpush1.bf16.msra.mxu0 %v340
    %540 = vmatprep.subr.bf16.mxu0 %v344
    %541 = vmatpush1.bf16.msra.mxu0 %v343
    %542 = vmatprep.subr.bf16.mxu0 %v347
    %543 = vmatpush1.bf16.msra.mxu0 %v346
    %544 = vmatprep.subr.bf16.mxu0 %v350
    %545 = vmatpush1.bf16.msra.mxu0 %v349
    %546 = vmatprep.subr.bf16.mxu0 %v353
    %547 = vmatpush1.bf16.msra.mxu0 %v352
    %548 = vmatprep.subr.bf16.mxu0 %v356
    %549 = vmatpush1.bf16.msra.mxu0 %v355
    %550 = vmatprep.subr.bf16.mxu0 %v359
    %551 = vmatpush1.bf16.msra.mxu0 %v358
    %552 = vmatprep.subr.bf16.mxu0 %v362
    %553 = vmatpush1.bf16.msra.mxu0 %v361
    %554 = vmatprep.mubr.bf16.mxu0 %v429
    %555 = vmatmul.mubr.bf16.gmra.mrb[0].mxu0 %v428
    %v556 = vpop.f32.mrb[0].mxu0
    %v557 = vadd.f32 %v516, %v556
    %v558 = vpop.f32.mrb[0].mxu0
    %v559 = vadd.f32 %v518, %v558
    %v560 = vpop.f32.mrb[0].mxu0
    %v561 = vpop.f32.mrb[0].mxu0
    %562 = vdwg.mxu0
    %563 = vmatprep.subr.bf16.mxu0 %v365
    %564 = vmatpush1.bf16.msra.mxu0 %v364
    %565 = vmatprep.subr.bf16.mxu0 %v368
    %566 = vmatpush1.bf16.msra.mxu0 %v367
    %567 = vmatprep.subr.bf16.mxu0 %v371
    %568 = vmatpush1.bf16.msra.mxu0 %v370
    %569 = vmatprep.subr.bf16.mxu0 %v374
    %570 = vmatpush1.bf16.msra.mxu0 %v373
    %571 = vmatprep.subr.bf16.mxu0 %v377
    %572 = vmatpush1.bf16.msra.mxu0 %v376
    %573 = vmatprep.subr.bf16.mxu0 %v380
    %574 = vmatpush1.bf16.msra.mxu0 %v379
    %575 = vmatprep.subr.bf16.mxu0 %v383
    %576 = vmatpush1.bf16.msra.mxu0 %v382
    %577 = vmatprep.subr.bf16.mxu0 %v386
    %578 = vmatpush1.bf16.msra.mxu0 %v385
    %579 = vmatprep.subr.bf16.mxu0 %v389
    %580 = vmatpush1.bf16.msra.mxu0 %v388
    %581 = vmatprep.subr.bf16.mxu0 %v392
    %582 = vmatpush1.bf16.msra.mxu0 %v391
    %583 = vmatprep.subr.bf16.mxu0 %v395
    %584 = vmatpush1.bf16.msra.mxu0 %v394
    %585 = vmatprep.subr.bf16.mxu0 %v398
    %586 = vmatpush1.bf16.msra.mxu0 %v397
    %587 = vmatprep.subr.bf16.mxu0 %v401
    %588 = vmatpush1.bf16.msra.mxu0 %v400
    %589 = vmatprep.subr.bf16.mxu0 %v404
    %590 = vmatpush1.bf16.msra.mxu0 %v403
    %591 = vmatprep.subr.bf16.mxu0 %v407
    %592 = vmatpush1.bf16.msra.mxu0 %v406
    %593 = vmatprep.subr.bf16.mxu0 %v410
    %594 = vmatpush1.bf16.msra.mxu0 %v409
    %595 = vmatprep.mubr.bf16.mxu0 %v431
    %596 = vmatmul.mubr.bf16.gmra.mrb[0].mxu0 %v430
    %v597 = vpop.f32.mrb[0].mxu0
    %v598 = vadd.f32 %v557, %v597
    %v599 = vpop.f32.mrb[0].mxu0
    %v600 = vadd.f32 %v559, %v599
    %v601 = vpop.f32.mrb[0].mxu0
    %v602 = vpop.f32.mrb[0].mxu0
    %603 = vdwg.mxu0
    %604 = vmatprep.subr.bf16.mxu0 0
    %605 = vmatpush1.bf16.msra.mxu0 %v222
    %606 = vmatprep.subr.bf16.mxu0 0
    %607 = vmatpush1.bf16.msra.mxu0 %v225
    %608 = vmatprep.subr.bf16.mxu0 0
    %609 = vmatpush1.bf16.msra.mxu0 %v228
    %610 = vmatprep.subr.bf16.mxu0 0
    %611 = vmatpush1.bf16.msra.mxu0 %v231
    %612 = vmatprep.subr.bf16.mxu0 0
    %613 = vmatpush1.bf16.msra.mxu0 %v234
    %614 = vmatprep.subr.bf16.mxu0 0
    %615 = vmatpush1.bf16.msra.mxu0 %v237
    %616 = vmatprep.subr.bf16.mxu0 0
    %617 = vmatpush1.bf16.msra.mxu0 %v240
    %618 = vmatprep.subr.bf16.mxu0 0
    %619 = vmatpush1.bf16.msra.mxu0 %v243
    %620 = vmatprep.subr.bf16.mxu0 0
    %621 = vmatpush1.bf16.msra.mxu0 %v246
    %622 = vmatprep.subr.bf16.mxu0 0
    %623 = vmatpush1.bf16.msra.mxu0 %v249
    %624 = vmatprep.subr.bf16.mxu0 0
    %625 = vmatpush1.bf16.msra.mxu0 %v252
    %626 = vmatprep.subr.bf16.mxu0 0
    %627 = vmatpush1.bf16.msra.mxu0 %v255
    %628 = vmatprep.subr.bf16.mxu0 0
    %629 = vmatpush1.bf16.msra.mxu0 %v258
    %630 = vmatprep.subr.bf16.mxu0 0
    %631 = vmatpush1.bf16.msra.mxu0 %v261
    %632 = vmatprep.subr.bf16.mxu0 0
    %633 = vmatpush1.bf16.msra.mxu0 %v264
    %634 = vmatprep.subr.bf16.mxu0 0
    %635 = vmatpush1.bf16.msra.mxu0 %v267
    %636 = vmatprep.mubr.bf16.mxu0 %v425
    %637 = vmatmul.mubr.bf16.gmra.mrb[0].mxu0 %v424
    %v638 = vpop.f32.mrb[0].mxu0
    %v639 = vadd.f32 0.0, %v638
    %v640 = vpop.f32.mrb[0].mxu0
    %v641 = vpop.f32.mrb[0].mxu0
    %v642 = vpop.f32.mrb[0].mxu0
    %643 = vdwg.mxu0
    %644 = vmatprep.subr.bf16.mxu0 0
    %645 = vmatpush1.bf16.msra.mxu0 %v270
    %646 = vmatprep.subr.bf16.mxu0 0
    %647 = vmatpush1.bf16.msra.mxu0 %v273
    %648 = vmatprep.subr.bf16.mxu0 0
    %649 = vmatpush1.bf16.msra.mxu0 %v276
    %650 = vmatprep.subr.bf16.mxu0 0
    %651 = vmatpush1.bf16.msra.mxu0 %v279
    %652 = vmatprep.subr.bf16.mxu0 0
    %653 = vmatpush1.bf16.msra.mxu0 %v282
    %654 = vmatprep.subr.bf16.mxu0 0
    %655 = vmatpush1.bf16.msra.mxu0 %v285
    %656 = vmatprep.subr.bf16.mxu0 0
    %657 = vmatpush1.bf16.msra.mxu0 %v288
    %658 = vmatprep.subr.bf16.mxu0 0
    %659 = vmatpush1.bf16.msra.mxu0 %v291
    %660 = vmatprep.subr.bf16.mxu0 0
    %661 = vmatpush1.bf16.msra.mxu0 %v294
    %662 = vmatprep.subr.bf16.mxu0 0
    %663 = vmatpush1.bf16.msra.mxu0 %v297
    %664 = vmatprep.subr.bf16.mxu0 0
    %665 = vmatpush1.bf16.msra.mxu0 %v300
    %666 = vmatprep.subr.bf16.mxu0 0
    %667 = vmatpush1.bf16.msra.mxu0 %v303
    %668 = vmatprep.subr.bf16.mxu0 0
    %669 = vmatpush1.bf16.msra.mxu0 %v306
    %670 = vmatprep.subr.bf16.mxu0 0
    %671 = vmatpush1.bf16.msra.mxu0 %v309
    %672 = vmatprep.subr.bf16.mxu0 0
    %673 = vmatpush1.bf16.msra.mxu0 %v312
    %674 = vmatprep.subr.bf16.mxu0 0
    %675 = vmatpush1.bf16.msra.mxu0 %v315
    %676 = vmatprep.mubr.bf16.mxu0 %v427
    %677 = vmatmul.mubr.bf16.gmra.mrb[0].mxu0 %v426
    %v678 = vpop.f32.mrb[0].mxu0
    %v679 = vadd.f32 %v639, %v678
    %v680 = vpop.f32.mrb[0].mxu0
    %v681 = vpop.f32.mrb[0].mxu0
    %v682 = vpop.f32.mrb[0].mxu0
    %683 = vdwg.mxu0
    %684 = vmatprep.subr.bf16.mxu0 0
    %685 = vmatpush1.bf16.msra.mxu0 %v318
    %686 = vmatprep.subr.bf16.mxu0 0
    %687 = vmatpush1.bf16.msra.mxu0 %v321
    %688 = vmatprep.subr.bf16.mxu0 0
    %689 = vmatpush1.bf16.msra.mxu0 %v324
    %690 = vmatprep.subr.bf16.mxu0 0
    %691 = vmatpush1.bf16.msra.mxu0 %v327
    %692 = vmatprep.subr.bf16.mxu0 0
    %693 = vmatpush1.bf16.msra.mxu0 %v330
    %694 = vmatprep.subr.bf16.mxu0 0
    %695 = vmatpush1.bf16.msra.mxu0 %v333
    %696 = vmatprep.subr.bf16.mxu0 0
    %697 = vmatpush1.bf16.msra.mxu0 %v336
    %698 = vmatprep.subr.bf16.mxu0 0
    %699 = vmatpush1.bf16.msra.mxu0 %v339
    %700 = vmatprep.subr.bf16.mxu0 0
    %701 = vmatpush1.bf16.msra.mxu0 %v342
    %702 = vmatprep.subr.bf16.mxu0 0
    %703 = vmatpush1.bf16.msra.mxu0 %v345
    %704 = vmatprep.subr.bf16.mxu0 0
    %705 = vmatpush1.bf16.msra.mxu0 %v348
    %706 = vmatprep.subr.bf16.mxu0 0
    %707 = vmatpush1.bf16.msra.mxu0 %v351
    %708 = vmatprep.subr.bf16.mxu0 0
    %709 = vmatpush1.bf16.msra.mxu0 %v354
    %710 = vmatprep.subr.bf16.mxu0 0
    %711 = vmatpush1.bf16.msra.mxu0 %v357
    %712 = vmatprep.subr.bf16.mxu0 0
    %713 = vmatpush1.bf16.msra.mxu0 %v360
    %714 = vmatprep.subr.bf16.mxu0 0
    %715 = vmatpush1.bf16.msra.mxu0 %v363
    %716 = vmatprep.mubr.bf16.mxu0 %v429
    %717 = vmatmul.mubr.bf16.gmra.mrb[0].mxu0 %v428
    %v718 = vpop.f32.mrb[0].mxu0
    %v719 = vadd.f32 %v679, %v718
    %v720 = vpop.f32.mrb[0].mxu0
    %v721 = vpop.f32.mrb[0].mxu0
    %v722 = vpop.f32.mrb[0].mxu0
    %723 = vdwg.mxu0
    %724 = vmatprep.subr.bf16.mxu0 0
    %725 = vmatpush1.bf16.msra.mxu0 %v366
    %726 = vmatprep.subr.bf16.mxu0 0
    %727 = vmatpush1.bf16.msra.mxu0 %v369
    %728 = vmatprep.subr.bf16.mxu0 0
    %729 = vmatpush1.bf16.msra.mxu0 %v372
    %730 = vmatprep.subr.bf16.mxu0 0
    %731 = vmatpush1.bf16.msra.mxu0 %v375
    %732 = vmatprep.subr.bf16.mxu0 0
    %733 = vmatpush1.bf16.msra.mxu0 %v378
    %734 = vmatprep.subr.bf16.mxu0 0
    %735 = vmatpush1.bf16.msra.mxu0 %v381
    %736 = vmatprep.subr.bf16.mxu0 0
    %737 = vmatpush1.bf16.msra.mxu0 %v384
    %738 = vmatprep.subr.bf16.mxu0 0
    %739 = vmatpush1.bf16.msra.mxu0 %v387
    %740 = vmatprep.subr.bf16.mxu0 0
    %741 = vmatpush1.bf16.msra.mxu0 %v390
    %742 = vmatprep.subr.bf16.mxu0 0
    %743 = vmatpush1.bf16.msra.mxu0 %v393
    %744 = vmatprep.subr.bf16.mxu0 0
    %745 = vmatpush1.bf16.msra.mxu0 %v396
    %746 = vmatprep.subr.bf16.mxu0 0
    %747 = vmatpush1.bf16.msra.mxu0 %v399
    %748 = vmatprep.subr.bf16.mxu0 0
    %749 = vmatpush1.bf16.msra.mxu0 %v402
    %750 = vmatprep.subr.bf16.mxu0 0
    %751 = vmatpush1.bf16.msra.mxu0 %v405
    %752 = vmatprep.subr.bf16.mxu0 0
    %753 = vmatpush1.bf16.msra.mxu0 %v408
    %754 = vmatprep.subr.bf16.mxu0 0
    %755 = vmatpush1.bf16.msra.mxu0 %v411
    %756 = vmatprep.mubr.bf16.mxu0 %v431
    %757 = vmatmul.mubr.bf16.gmra.mrb[0].mxu0 %v430
    %v758 = vpop.f32.mrb[0].mxu0
    %v759 = vadd.f32 %v719, %v758
    %v760 = vpop.f32.mrb[0].mxu0
    %v761 = vpop.f32.mrb[0].mxu0
    %v762 = vpop.f32.mrb[0].mxu0
    %763 = vdwg.mxu0
    %v764 = vld [vmem:[#allocation2] sm:$0xff]
    %v765 = vld [vmem:[%s3] sm:$0x7]
    %v767 = vlaneseq
    %v768 = vshrl.u32 %v767, 7
    %v769 = vsub.s32 0, %v768
    %v770 = vrot.slane %v765, %v769
    %v771 = vlaneseq
    %v772 = vshrl.u32 %v771, 7
    %v773 = vsub.s32 1, %v772
    %v774 = vrot.slane %v765, %v773
    %v775 = vlaneseq
    %v776 = vshrl.u32 %v775, 7
    %v777 = vsub.s32 2, %v776
    %v778 = vrot.slane %v765, %v777
    %v782 = vmul.f32 %v598, %v770
    %v783 = vmul.f32 %v600, %v774
    %v784 = vmul.f32 %v759, %v778
    %v785 = vld [vmem:[#allocation8] sm:$0x7]
    %v787 = vlaneseq
    %v788 = vshrl.u32 %v787, 7
    %v789 = vsub.s32 0, %v788
    %v790 = vrot.slane %v785, %v789
    %v791 = vlaneseq
    %v792 = vshrl.u32 %v791, 7
    %v793 = vsub.s32 1, %v792
    %v794 = vrot.slane %v785, %v793
    %v795 = vlaneseq
    %v796 = vshrl.u32 %v795, 7
    %v797 = vsub.s32 2, %v796
    %v798 = vrot.slane %v785, %v797
    %v802 = vadd.f32 %v782, %v790
    %v803 = vadd.f32 %v783, %v794
    %v804 = vadd.f32 %v784, %v798
    %v805 = vpack.c.bf16 %v764, %v764
    %v806 = vld [vmem:[#allocation7] sm:$0xff]
    %v807 = vld [vmem:[#allocation7 + $0x8] sm:$0xf]
    %v808 = vld [vmem:[#allocation7 + $0xc] sm:$0xff]
    %v809 = vld [vmem:[#allocation7 + $0x14] sm:$0xf]
    %v810 = vld [vmem:[#allocation7 + $0x18] sm:$0xff]
    %v811 = vld [vmem:[#allocation7 + $0x20] sm:$0xf]
    %v812 = vld [vmem:[#allocation7 + $0x24] sm:$0xff]
    %v813 = vld [vmem:[#allocation7 + $0x2c] sm:$0xf]
    %v814 = vld [vmem:[#allocation7 + $0x30] sm:$0xff]
    %v815 = vld [vmem:[#allocation7 + $0x38] sm:$0xf]
    %v816 = vld [vmem:[#allocation7 + $0x3c] sm:$0xff]
    %v817 = vld [vmem:[#allocation7 + $0x44] sm:$0xf]
    %v818 = vld [vmem:[#allocation7 + $0x48] sm:$0xff]
    %v819 = vld [vmem:[#allocation7 + $0x50] sm:$0xf]
    %v820 = vld [vmem:[#allocation7 + $0x54] sm:$0xff]
    %v821 = vld [vmem:[#allocation7 + $0x5c] sm:$0xf]
    %v822 = vld [vmem:[#allocation7 + $0x60] sm:$0xff]
    %v823 = vld [vmem:[#allocation7 + $0x68] sm:$0xf]
    %v824 = vld [vmem:[#allocation7 + $0x6c] sm:$0xff]
    %v825 = vld [vmem:[#allocation7 + $0x74] sm:$0xf]
    %v826 = vld [vmem:[#allocation7 + $0x78] sm:$0xff]
    %v827 = vld [vmem:[#allocation7 + $0x80] sm:$0xf]
    %v828 = vld [vmem:[#allocation7 + $0x84] sm:$0xff]
    %v829 = vld [vmem:[#allocation7 + $0x8c] sm:$0xf]
    %v830 = vld [vmem:[#allocation7 + $0x90] sm:$0xff]
    %v831 = vld [vmem:[#allocation7 + $0x98] sm:$0xf]
    %v832 = vld [vmem:[#allocation7 + $0x9c] sm:$0xff]
    %v833 = vld [vmem:[#allocation7 + $0xa4] sm:$0xf]
    %v834 = vld [vmem:[#allocation7 + $0xa8] sm:$0xff]
    %v835 = vld [vmem:[#allocation7 + $0xb0] sm:$0xf]
    %v836 = vld [vmem:[#allocation7 + $0xb4] sm:$0xff]
    %v837 = vld [vmem:[#allocation7 + $0xbc] sm:$0xf]
    %v838 = vld [vmem:[#allocation10] sm:$0x7]
    %v840 = vlaneseq
    %v841 = vshrl.u32 %v840, 7
    %v842 = vsub.s32 0, %v841
    %v843 = vrot.slane %v838, %v842
    %v844 = vlaneseq
    %v845 = vshrl.u32 %v844, 7
    %v846 = vsub.s32 1, %v845
    %v847 = vrot.slane %v838, %v846
    %v848 = vlaneseq
    %v849 = vshrl.u32 %v848, 7
    %v850 = vsub.s32 2, %v849
    %v851 = vrot.slane %v838, %v850
    %v887 = vunpack.c.l.b16 %v806
    %v888 = vunpack.c.h.b16 %v806
    %v889 = vunpack.c.l.b16 %v807
    %v890 = vunpack.c.l.b16 %v808
    %v891 = vunpack.c.h.b16 %v808
    %v892 = vunpack.c.l.b16 %v809
    %v893 = vunpack.c.l.b16 %v810
    %v894 = vunpack.c.h.b16 %v810
    %v895 = vunpack.c.l.b16 %v811
    %v896 = vunpack.c.l.b16 %v812
    %v897 = vunpack.c.h.b16 %v812
    %v898 = vunpack.c.l.b16 %v813
    %v899 = vunpack.c.l.b16 %v814
    %v900 = vunpack.c.h.b16 %v814
    %v901 = vunpack.c.l.b16 %v815
    %v902 = vunpack.c.l.b16 %v816
    %v903 = vunpack.c.h.b16 %v816
    %v904 = vunpack.c.l.b16 %v817
    %v905 = vunpack.c.l.b16 %v818
    %v906 = vunpack.c.h.b16 %v818
    %v907 = vunpack.c.l.b16 %v819
    %v908 = vunpack.c.l.b16 %v820
    %v909 = vunpack.c.h.b16 %v820
    %v910 = vunpack.c.l.b16 %v821
    %v911 = vunpack.c.l.b16 %v822
    %v912 = vunpack.c.h.b16 %v822
    %v913 = vunpack.c.l.b16 %v823
    %v914 = vunpack.c.l.b16 %v824
    %v915 = vunpack.c.h.b16 %v824
    %v916 = vunpack.c.l.b16 %v825
    %v917 = vunpack.c.l.b16 %v826
    %v918 = vunpack.c.h.b16 %v826
    %v919 = vunpack.c.l.b16 %v827
    %v920 = vunpack.c.l.b16 %v828
    %v921 = vunpack.c.h.b16 %v828
    %v922 = vunpack.c.l.b16 %v829
    %v923 = vunpack.c.l.b16 %v830
    %v924 = vunpack.c.h.b16 %v830
    %v925 = vunpack.c.l.b16 %v831
    %v926 = vunpack.c.l.b16 %v832
    %v927 = vunpack.c.h.b16 %v832
    %v928 = vunpack.c.l.b16 %v833
    %v929 = vunpack.c.l.b16 %v834
    %v930 = vunpack.c.h.b16 %v834
    %v931 = vunpack.c.l.b16 %v835
    %v932 = vunpack.c.l.b16 %v836
    %v933 = vunpack.c.h.b16 %v836
    %v934 = vunpack.c.l.b16 %v837
    %v935 = vpack.c.b16 %v890, %v887
    %v936 = vpack.c.b16 %v891, %v888
    %v937 = vpack.c.b16 %v892, %v889
    %v938 = vpack.c.b16 %v896, %v893
    %v939 = vpack.c.b16 %v897, %v894
    %v940 = vpack.c.b16 %v898, %v895
    %v941 = vpack.c.b16 %v902, %v899
    %v942 = vpack.c.b16 %v903, %v900
    %v943 = vpack.c.b16 %v904, %v901
    %v944 = vpack.c.b16 %v908, %v905
    %v945 = vpack.c.b16 %v909, %v906
    %v946 = vpack.c.b16 %v910, %v907
    %v947 = vpack.c.b16 %v914, %v911
    %v948 = vpack.c.b16 %v915, %v912
    %v949 = vpack.c.b16 %v916, %v913
    %v950 = vpack.c.b16 %v920, %v917
    %v951 = vpack.c.b16 %v921, %v918
    %v952 = vpack.c.b16 %v922, %v919
    %v953 = vpack.c.b16 %v926, %v923
    %v954 = vpack.c.b16 %v927, %v924
    %v955 = vpack.c.b16 %v928, %v925
    %v956 = vpack.c.b16 %v932, %v929
    %v957 = vpack.c.b16 %v933, %v930
    %v958 = vpack.c.b16 %v934, %v931
    %983 = vmatprep.subr.bf16.mxu0 %v936
    %984 = vmatpush1.bf16.msra.mxu0 %v935
    %985 = vmatprep.subr.bf16.mxu0 %v939
    %986 = vmatpush1.bf16.msra.mxu0 %v938
    %987 = vmatprep.subr.bf16.mxu0 %v942
    %988 = vmatpush1.bf16.msra.mxu0 %v941
    %989 = vmatprep.subr.bf16.mxu0 %v945
    %990 = vmatpush1.bf16.msra.mxu0 %v944
    %991 = vmatprep.subr.bf16.mxu0 %v948
    %992 = vmatpush1.bf16.msra.mxu0 %v947
    %993 = vmatprep.subr.bf16.mxu0 %v951
    %994 = vmatpush1.bf16.msra.mxu0 %v950
    %995 = vmatprep.subr.bf16.mxu0 %v954
    %996 = vmatpush1.bf16.msra.mxu0 %v953
    %997 = vmatprep.subr.bf16.mxu0 %v957
    %998 = vmatpush1.bf16.msra.mxu0 %v956
    %999 = vmatprep.subr.bf16.mxu0 0
    %1000 = vmatpush1.bf16.msra.mxu0 0
    %1001 = vmatprep.subr.bf16.mxu0 0
    %1002 = vmatpush1.bf16.msra.mxu0 0
    %1003 = vmatprep.subr.bf16.mxu0 0
    %1004 = vmatpush1.bf16.msra.mxu0 0
    %1005 = vmatprep.subr.bf16.mxu0 0
    %1006 = vmatpush1.bf16.msra.mxu0 0
    %1007 = vmatprep.subr.bf16.mxu0 0
    %1008 = vmatpush1.bf16.msra.mxu0 0
    %1009 = vmatprep.subr.bf16.mxu0 0
    %1010 = vmatpush1.bf16.msra.mxu0 0
    %1011 = vmatprep.subr.bf16.mxu0 0
    %1012 = vmatpush1.bf16.msra.mxu0 0
    %1013 = vmatprep.subr.bf16.mxu0 0
    %1014 = vmatpush1.bf16.msra.mxu0 0
    %1015 = vmatprep.mubr.bf16.mxu0 0
    %1016 = vmatmul.mubr.bf16.gmra.mrb[0].mxu0 %v805
    %v1017 = vpop.f32.mrb[0].mxu0
    %v1018 = vadd.f32 %v843, %v1017
    %v1019 = vpop.f32.mrb[0].mxu0
    %v1020 = vadd.f32 %v847, %v1019
    %v1021 = vpop.f32.mrb[0].mxu0
    %v1022 = vpop.f32.mrb[0].mxu0
    %1023 = vdwg.mxu0
    %1024 = vmatprep.subr.bf16.mxu0 0
    %1025 = vmatpush1.bf16.msra.mxu0 %v937
    %1026 = vmatprep.subr.bf16.mxu0 0
    %1027 = vmatpush1.bf16.msra.mxu0 %v940
    %1028 = vmatprep.subr.bf16.mxu0 0
    %1029 = vmatpush1.bf16.msra.mxu0 %v943
    %1030 = vmatprep.subr.bf16.mxu0 0
    %1031 = vmatpush1.bf16.msra.mxu0 %v946
    %1032 = vmatprep.subr.bf16.mxu0 0
    %1033 = vmatpush1.bf16.msra.mxu0 %v949
    %1034 = vmatprep.subr.bf16.mxu0 0
    %1035 = vmatpush1.bf16.msra.mxu0 %v952
    %1036 = vmatprep.subr.bf16.mxu0 0
    %1037 = vmatpush1.bf16.msra.mxu0 %v955
    %1038 = vmatprep.subr.bf16.mxu0 0
    %1039 = vmatpush1.bf16.msra.mxu0 %v958
    %1040 = vmatprep.subr.bf16.mxu0 0
    %1041 = vmatpush1.bf16.msra.mxu0 0
    %1042 = vmatprep.subr.bf16.mxu0 0
    %1043 = vmatpush1.bf16.msra.mxu0 0
    %1044 = vmatprep.subr.bf16.mxu0 0
    %1045 = vmatpush1.bf16.msra.mxu0 0
    %1046 = vmatprep.subr.bf16.mxu0 0
    %1047 = vmatpush1.bf16.msra.mxu0 0
    %1048 = vmatprep.subr.bf16.mxu0 0
    %1049 = vmatpush1.bf16.msra.mxu0 0
    %1050 = vmatprep.subr.bf16.mxu0 0
    %1051 = vmatpush1.bf16.msra.mxu0 0
    %1052 = vmatprep.subr.bf16.mxu0 0
    %1053 = vmatpush1.bf16.msra.mxu0 0
    %1054 = vmatprep.subr.bf16.mxu0 0
    %1055 = vmatpush1.bf16.msra.mxu0 0
    %1056 = vmatprep.mubr.bf16.mxu0 0
    %1057 = vmatmul.mubr.bf16.gmra.mrb[0].mxu0 %v805
    %v1058 = vpop.f32.mrb[0].mxu0
    %v1059 = vadd.f32 %v851, %v1058
    %v1060 = vpop.f32.mrb[0].mxu0
    %v1061 = vpop.f32.mrb[0].mxu0
    %v1062 = vpop.f32.mrb[0].mxu0
    %1063 = vdwg.mxu0
    %v1064 = vadd.f32 %v802, %v1018
    %v1065 = vxor.u32 %v1064, 2147483648
    %v1066 = vmul.f32 %v1065, 1.442695
    %v1067 = vpow.pop %v1066
    %v1068 = vadd.f32 %v1067, 1.0
    %v1069 = vrcp.pop %v1068
    %v1070 = vmul.f32 1.0, %v1069
    %v1071 = vadd.f32 %v803, %v1020
    %v1072 = vxor.u32 %v1071, 2147483648
    %v1073 = vmul.f32 %v1072, 1.442695
    %v1074 = vpow.pop %v1073
    %v1075 = vadd.f32 %v1074, 1.0
    %v1076 = vrcp.pop %v1075
    %v1077 = vmul.f32 1.0, %v1076
    %v1078 = vmul.f32 %v1070, %v1059
    %v1079 = vadd.f32 %v804, %v1078
    %v1080 = vtanh.pop %v1079
    %v1081 = vsub.f32 1.0, %v1077
    %v1082 = vmul.f32 %v1081, %v1080
    %v1083 = vmul.f32 %v1077, %v764
    %v1084 = vadd.f32 %v1082, %v1083
    %v1085 = vpack.c.bf16 %v1084, %v1084
    %v1086 = vld [vmem:[#allocation11] sm:$0xf]
    %v1087 = vld [vmem:[#allocation11 + $0x4] sm:$0xf]
    %v1088 = vld [vmem:[#allocation11 + $0x8] sm:$0xf]
    %v1089 = vld [vmem:[#allocation11 + $0xc] sm:$0xf]
    %v1090 = vld [vmem:[#allocation11 + $0x10] sm:$0xf]
    %v1091 = vld [vmem:[#allocation11 + $0x14] sm:$0xf]
    %v1092 = vld [vmem:[#allocation11 + $0x18] sm:$0xf]
    %v1093 = vld [vmem:[#allocation11 + $0x1c] sm:$0xf]
    %v1094 = vld [vmem:[#allocation11 + $0x20] sm:$0xf]
    %v1095 = vld [vmem:[#allocation11 + $0x24] sm:$0xf]
    %v1096 = vld [vmem:[#allocation11 + $0x28] sm:$0xf]
    %v1097 = vld [vmem:[#allocation11 + $0x2c] sm:$0xf]
    %v1098 = vld [vmem:[#allocation11 + $0x30] sm:$0xf]
    %v1099 = vld [vmem:[#allocation11 + $0x34] sm:$0xf]
    %v1100 = vld [vmem:[#allocation11 + $0x38] sm:$0xf]
    %v1101 = vld [vmem:[#allocation11 + $0x3c] sm:$0xf]
    %v1102 = vld [vmem:[%s8] sm:$0x1]
    %v1104 = vlaneseq
    %v1105 = vshrl.u32 %v1104, 7
    %v1106 = vsub.s32 0, %v1105
    %v1107 = vrot.slane %v1102, %v1106
    %v1125 = vunpack.c.l.b16 %v1086
    %v1126 = vunpack.c.l.b16 %v1087
    %v1127 = vunpack.c.l.b16 %v1088
    %v1128 = vunpack.c.l.b16 %v1089
    %v1129 = vunpack.c.l.b16 %v1090
    %v1130 = vunpack.c.l.b16 %v1091
    %v1131 = vunpack.c.l.b16 %v1092
    %v1132 = vunpack.c.l.b16 %v1093
    %v1133 = vunpack.c.l.b16 %v1094
    %v1134 = vunpack.c.l.b16 %v1095
    %v1135 = vunpack.c.l.b16 %v1096
    %v1136 = vunpack.c.l.b16 %v1097
    %v1137 = vunpack.c.l.b16 %v1098
    %v1138 = vunpack.c.l.b16 %v1099
    %v1139 = vunpack.c.l.b16 %v1100
    %v1140 = vunpack.c.l.b16 %v1101
    %v1141 = vpack.c.b16 %v1126, %v1125
    %v1142 = vpack.c.b16 %v1128, %v1127
    %v1143 = vpack.c.b16 %v1130, %v1129
    %v1144 = vpack.c.b16 %v1132, %v1131
    %v1145 = vpack.c.b16 %v1134, %v1133
    %v1146 = vpack.c.b16 %v1136, %v1135
    %v1147 = vpack.c.b16 %v1138, %v1137
    %v1148 = vpack.c.b16 %v1140, %v1139
    %1157 = vmatprep.subr.bf16.mxu0 0
    %1158 = vmatpush1.bf16.msra.mxu0 %v1141
    %1159 = vmatprep.subr.bf16.mxu0 0
    %1160 = vmatpush1.bf16.msra.mxu0 %v1142
    %1161 = vmatprep.subr.bf16.mxu0 0
    %1162 = vmatpush1.bf16.msra.mxu0 %v1143
    %1163 = vmatprep.subr.bf16.mxu0 0
    %1164 = vmatpush1.bf16.msra.mxu0 %v1144
    %1165 = vmatprep.subr.bf16.mxu0 0
    %1166 = vmatpush1.bf16.msra.mxu0 %v1145
    %1167 = vmatprep.subr.bf16.mxu0 0
    %1168 = vmatpush1.bf16.msra.mxu0 %v1146
    %1169 = vmatprep.subr.bf16.mxu0 0
    %1170 = vmatpush1.bf16.msra.mxu0 %v1147
    %1171 = vmatprep.subr.bf16.mxu0 0
    %1172 = vmatpush1.bf16.msra.mxu0 %v1148
    %1173 = vmatprep.subr.bf16.mxu0 0
    %1174 = vmatpush1.bf16.msra.mxu0 0
    %1175 = vmatprep.subr.bf16.mxu0 0
    %1176 = vmatpush1.bf16.msra.mxu0 0
    %1177 = vmatprep.subr.bf16.mxu0 0
    %1178 = vmatpush1.bf16.msra.mxu0 0
    %1179 = vmatprep.subr.bf16.mxu0 0
    %1180 = vmatpush1.bf16.msra.mxu0 0
    %1181 = vmatprep.subr.bf16.mxu0 0
    %1182 = vmatpush1.bf16.msra.mxu0 0
    %1183 = vmatprep.subr.bf16.mxu0 0
    %1184 = vmatpush1.bf16.msra.mxu0 0
    %1185 = vmatprep.subr.bf16.mxu0 0
    %1186 = vmatpush1.bf16.msra.mxu0 0
    %1187 = vmatprep.subr.bf16.mxu0 0
    %1188 = vmatpush1.bf16.msra.mxu0 0
    %1189 = vmatprep.mubr.bf16.mxu0 0
    %1190 = vmatmul.mubr.bf16.gmra.mrb[0].mxu0 %v1085
    %v1191 = vpop.f32.mrb[0].mxu0
    %v1192 = vadd.f32 %v1107, %v1191
    %v1193 = vpop.f32.mrb[0].mxu0
    %v1194 = vpop.f32.mrb[0].mxu0
    %v1195 = vpop.f32.mrb[0].mxu0
    %1196 = vdwg.mxu0
    %v1197 = vlaneseq
    %v1198 = vand.u32 %v1197, 127
    %v1199 = vld [vmem:[%s9] sm:$0xff]
    %vm1200 = vcmp.ne.s32.totalorder %v1199, 0
    %vm1201 = vcmp.eq.s32.totalorder %v1198, 127
    %v1202 = vsel %vm1201, %v1192, 0.0
    %1203 = vadd.xlane.f32.xlu0 %v1202
    %v1204 = vpop.xlane.xlu0 %1203
    %v1205 = vsel %vm1200, %v1192, -3.4028235e+38
    %1206 = vmax.xlane.f32.xlu0 %v1205
    %v1207 = vpop.xlane.xlu0 %1206
    %v1208 = vsub.f32 %v1205, %v1207
    %v1209 = vmul.f32 %v1208, 1.442695
    %v1210 = vpow.pop %v1209
    %1211 = vadd.xlane.f32.xlu0 %v1210
    %v1212 = vpop.xlane.xlu0 %1211
    %v1213 = vrcp.pop %v1212
    %v1214 = vmul.f32 %v1210, %v1213
    %v1215 = vlog2.pop %v1212
    %v1216 = vmul.f32 %v1215, 0.6931472
    %v1217 = vsub.f32 %v1208, %v1216
    %v1218 = vld [vmem:[%s10] sm:$0xff]
    %v1219 = vadd.f32 %v1217, %v1218
    %v1220 = vsel %vm1200, %v1219, -3.4028235e+38
    %1221 = vmax.xlane.f32.xlu0 %v1220
    %v1222 = vpop.xlane.xlu0 %1221
    %vm1223 = vcmp.eq.f32.partialorder %v1220, %v1222
    %v1224 = vsel %vm1223, %v1198, 128
    %v1225 = vand.u32 %v1224, 65535
    %v1226 = vshra.s32 %v1224, 16
    %v1227 = vcvt.s32.f32 %v1225
    %v1228 = vcvt.s32.f32 %v1226
    %1229 = vmin.xlane.f32.xlu0 %v1228
    %v1230 = vpop.xlane.xlu0 %1229
    %vm1231 = vcmp.eq.f32.partialorder %v1228, %v1230
    %v1232 = vsel %vm1231, %v1227, inf
    %1233 = vmin.xlane.f32.xlu0 %v1232
    %v1234 = vpop.xlane.xlu0 %1233
    %v1235 = vcvt.f32.s32 %v1234
    %v1236 = vcvt.f32.s32 %v1230
    %v1237 = vshll.u32 %v1236, 16
    %v1238 = vadd.s32 %v1237, %v1235
    %vm1239 = vcmp.eq.s32.totalorder %v1198, %v1238
    %v1240 = vsel %vm1239, %v1217, 0.0
    %1241 = vadd.xlane.f32.xlu0 %v1240
    %v1242 = vpop.xlane.xlu0 %1241
    %v1243 = vsel %vm1200, %v1217, 0.0
    %v1244 = vmul.f32 %v1243, %v1214
    %1245 = vadd.xlane.f32.xlu0 %v1244
    %v1246 = vpop.xlane.xlu0 %1245
    %v1247 = vsub.f32 0.0, %v1246
    %vm1248 = vcmp.eq.s32.totalorder %v1198, 0
    %v1249 = vcvt.s32.f32 %v1238
    %vm1250 = vcmp.eq.s32.totalorder %v1198, 1
    %vm1251 = vcmp.eq.s32.totalorder %v1198, 2
    %vm1252 = vcmp.eq.s32.totalorder %v1198, 3
    %v1253 = vsel %vm1252, %v1204, 0.0
    %v1254 = vsel %vm1251, %v1247, %v1253
    %v1255 = vsel %vm1250, %v1242, %v1254
    %v1256 = vsel %vm1248, %v1249, %v1255
    %1257 = vst [vmem:[#allocation13] sm:$0xff] %v1256
    %1258 = vst [vmem:[#allocation14] sm:$0xff] %v1214
    %1259 = vst [vmem:[#allocation16] sm:$0xff] %v1084
    // Predicated region
    $region70: #{tpu_custom_call.1} parent=1 // pred_check
      _
    $region71: #{tpu_custom_call.1} parent=1 // pred_check_branch
      %1261 = sbr.rel (0) target = $region73
    $region72: #{tpu_custom_call.1} parent=1 // pred_region
      %s1263 = ssub.s32 128, 128
      %1264 = vsyncadd [#allocation4], %s1263
      %s1266 = sshll.u32 [#allocation13], 4
      %s1267 = int_to_ptr.vmem [resolvable:$true] %s1266
      %1269 = dma.vmem_to_hbm [thread:$0]  %s1267, 128, %s11, [#allocation4]
    $region73: #{tpu_custom_call.1} parent=1 // pred_fallthru
      _
    // Predicated region
    $region74: #{tpu_custom_call.1} parent=1 // pred_check
      _
    $region75: #{tpu_custom_call.1} parent=1 // pred_check_branch
      %1271 = sbr.rel (0) target = $region77
    $region76: #{tpu_custom_call.1} parent=1 // pred_region
      %s1273 = ssub.s32 128, 128
      %1274 = vsyncadd [#allocation15], %s1273
      %s1276 = sshll.u32 [#allocation14], 4
      %s1277 = int_to_ptr.vmem [resolvable:$true] %s1276
      %1279 = dma.vmem_to_hbm [thread:$0]  %s1277, 128, %s12, [#allocation15]
    $region77: #{tpu_custom_call.1} parent=1 // pred_fallthru
      _
    // Predicated region
    $region78: #{tpu_custom_call.1} parent=1 // pred_check
      _
    $region79: #{tpu_custom_call.1} parent=1 // pred_check_branch
      %1281 = sbr.rel (0) target = $region81
    $region80: #{tpu_custom_call.1} parent=1 // pred_region
      %s1283 = ssub.s32 128, 128
      %1284 = vsyncadd [#allocation15], %s1283
      %s1286 = sshll.u32 [#allocation16], 4
      %s1287 = int_to_ptr.vmem [resolvable:$true] %s1286
      %1289 = dma.vmem_to_hbm [thread:$0]  %s1287, 128, %s13, [#allocation15]
    $region81: #{tpu_custom_call.1} parent=1 // pred_fallthru
      _
    // Predicated region
    $region82: #{tpu_custom_call.1} parent=1 // pred_check
      _
    $region83: #{tpu_custom_call.1} parent=1 // pred_check_branch
      %1291 = sbr.rel (0) target = $region85
    $region84: #{tpu_custom_call.1} parent=1 // pred_region
      %1292 = dma.done [#allocation4], 128
    $region85: #{tpu_custom_call.1} parent=1 // pred_fallthru
      _
    // Predicated region
    $region86: #{tpu_custom_call.1} parent=1 // pred_check
      _
    $region87: #{tpu_custom_call.1} parent=1 // pred_check_branch
      %1294 = sbr.rel (0) target = $region89
    $region88: #{tpu_custom_call.1} parent=1 // pred_region
      %1295 = dma.done [#allocation15], 128
    $region89: #{tpu_custom_call.1} parent=1 // pred_fallthru
      _
    // Predicated region
    $region90: #{tpu_custom_call.1} parent=1 // pred_check
      _
    $region91: #{tpu_custom_call.1} parent=1 // pred_check_branch
      %1297 = sbr.rel (0) target = $region93
    $region92: #{tpu_custom_call.1} parent=1 // pred_region
      %1298 = dma.done [#allocation15], 128
    $region93: #{tpu_custom_call.1} parent=1 // pred_fallthru
      _
    %1299 = vsyncpa [#allocation3], 1
    %1300 = vsyncpa [#allocation6], 1
    %1301 = vsyncpa [#allocation9], 1
    %1302 = vsyncpa [#allocation12], 1
    %1303 = vsyncpa [#allocation4], 1
    %1304 = vsyncpa [#allocation15], 1

</llo_original>
